<compile_context>
chip_gen: v7x
topology: tpu7x:2x2x1
jax: 0.10.0
libtpu: 0.0.40
codegen_flags: <defaults>
</compile_context>

<pallas_src>
import math

import jax
import jax.numpy as jnp
from jax.experimental import pallas as pl
from jax.experimental.pallas import tpu as pltpu

BATCH = 2
SEQ = 8          # seq_len_q == seq_len_k == seq_len_v
D_MODEL = 32
NUM_HEADS = 4
D_K = D_MODEL // NUM_HEADS
DROPOUT = 0.0    # nn.Dropout in eval mode -> identity
# TODO(synk): training-mode dropout on the attention weights is not implemented
#             (would need pltpu.prng_seed / pltpu.prng_random_bits in-kernel).


def _attention_core(qp, kp, vp, wo_t, o_ref):
    """Scaled dot-product attention over all heads + output projection.

    qp/kp/vp: (B, S, D_MODEL) float32 projected activations.
    wo_t:     (D_MODEL, D_MODEL) float32, W_o pre-transposed to (in, out).
    """
    B, S, D = qp.shape
    d_k = D // NUM_HEADS
    scale = 1.0 / math.sqrt(d_k)

    ctx = []
    for h in range(NUM_HEADS):                        # static unroll over heads
        lo = h * d_k
        qh = qp[:, :, lo:lo + d_k]                    # (B, S, d_k) static slices
        kh = kp[:, :, lo:lo + d_k]
        vh = vp[:, :, lo:lo + d_k]

        s = jnp.einsum("bqd,bkd->bqk", qh, kh,
                       preferred_element_type=jnp.float32) * scale   # (B, S, S)
        s = s - jnp.max(s, axis=-1, keepdims=True)
        e = jnp.exp(s)
        denom = jnp.sum(e, axis=-1, keepdims=True)
        inv = pl.reciprocal(denom, approx=True)       # EUP slot, off the VALU path
        inv = inv * (2.0 - denom * inv)               # one Newton step -> ~f32 exact
        attn = e * inv
        ctx.append(jnp.einsum("bqk,bkd->bqd", attn, vh,
                              preferred_element_type=jnp.float32))   # (B, S, d_k)

    # concat_heads + W_o fused into one full-width matmul.
    ctx_all = jnp.concatenate(ctx, axis=-1).reshape(B * S, D)
    out = jnp.dot(ctx_all, wo_t, preferred_element_type=jnp.float32)
    o_ref[...] = out.reshape(B, S, D).astype(o_ref.dtype)


def mha_self_kernel(x_ref, wqkv_t_ref, wo_t_ref, o_ref):
    """Self-attention path: fused QKV projection (a single MXU matmul)."""
    B, S, D = x_ref.shape
    x2 = x_ref[...].reshape(B * S, D).astype(jnp.float32)
    wqkv_t = wqkv_t_ref[...].astype(jnp.float32)      # (D, 3D), pre-transposed
    qkv = jnp.dot(x2, wqkv_t, preferred_element_type=jnp.float32)    # (B*S, 3D)
    qkv = qkv.reshape(B, S, 3 * D)
    qp = qkv[:, :, 0:D]
    kp = qkv[:, :, D:2 * D]
    vp = qkv[:, :, 2 * D:3 * D]
    _attention_core(qp, kp, vp, wo_t_ref[...].astype(jnp.float32), o_ref)


def mha_cross_kernel(q_ref, k_ref, v_ref, wq_t_ref, wk_t_ref, wv_t_ref,
                     wo_t_ref, o_ref):
    """General (cross) attention path: distinct Q/K/V sources."""
    B, S, D = q_ref.shape

    def proj(a_ref, w_t_ref):
        a2 = a_ref[...].reshape(B * S, D).astype(jnp.float32)
        w_t = w_t_ref[...].astype(jnp.float32)
        return jnp.dot(a2, w_t, preferred_element_type=jnp.float32).reshape(B, S, D)

    qp = proj(q_ref, wq_t_ref)
    kp = proj(k_ref, wk_t_ref)
    vp = proj(v_ref, wv_t_ref)
    _attention_core(qp, kp, vp, wo_t_ref[...].astype(jnp.float32), o_ref)


def multi_head_attention(q, k, v, wq, wk, wv, wo):
    """Equivalent of MultiHeadAttentionBlock.forward(Q, K, V, mask=None).

    Weights use PyTorch nn.Linear convention (out_features, in_features);
    they are pre-transposed / stacked wrapper-side so the kernel never
    transposes or column-slices them.
    """
    B, S, D = q.shape
    assert D == D_MODEL and D % NUM_HEADS == 0

    self_attn = (k is None or k is q) and (v is None or v is q)
    wo_t = wo.T

    act_spec = pl.BlockSpec((B, S, D), lambda i: (0, 0, 0))
    sq_spec = pl.BlockSpec((D, D), lambda i: (0, 0))
    out_shape = jax.ShapeDtypeStruct((B, S, D), q.dtype)
    cparams = pltpu.CompilerParams(dimension_semantics=("arbitrary",))

    if self_attn:
        wqkv_t = jnp.concatenate([wq.T, wk.T, wv.T], axis=1)   # (D, 3D)
        return pl.pallas_call(
            mha_self_kernel,
            out_shape=out_shape,
            grid_spec=pltpu.PrefetchScalarGridSpec(
                num_scalar_prefetch=0,
                grid=(1,),
                in_specs=[act_spec,
                          pl.BlockSpec((D, 3 * D), lambda i: (0, 0)),
                          sq_spec],
                out_specs=act_spec,
            ),
            compiler_params=cparams,
        )(q, wqkv_t, wo_t)

    k = q if k is None else k
    v = q if v is None else v
    return pl.pallas_call(
        mha_cross_kernel,
        out_shape=out_shape,
        grid_spec=pltpu.PrefetchScalarGridSpec(
            num_scalar_prefetch=0,
            grid=(1,),
            in_specs=[act_spec, act_spec, act_spec,
                      sq_spec, sq_spec, sq_spec, sq_spec],
            out_specs=act_spec,
        ),
        compiler_params=cparams,
    )(q, k, v, wq.T, wk.T, wv.T, wo_t)


def mha_reference(q, k, v, wq, wk, wv, wo):
    """Pure-JAX reference matching the PyTorch module (eval mode, mask=None)."""
    B, S, D = q.shape
    Q = jnp.einsum("bsd,od->bso", q, wq)
    K = jnp.einsum("bsd,od->bso", k, wk)
    V = jnp.einsum("bsd,od->bso", v, wv)

    def split(x):
        return x.reshape(B, S, NUM_HEADS, D_K).transpose(0, 2, 1, 3)

    Qh, Kh, Vh = split(Q), split(K), split(V)
    scores = jnp.einsum("bhqd,bhkd->bhqk", Qh, Kh) / math.sqrt(D_K)
    attn = jax.nn.softmax(scores, axis=-1)
    ctx = jnp.einsum("bhqk,bhkd->bhqd", attn, Vh)
    out = ctx.transpose(0, 2, 1, 3).reshape(B, S, D)
    return jnp.einsum("bsd,od->bso", out, wo)


if __name__ == "__main__":
    key = jax.random.PRNGKey(0)
    k_x, k_kv, k_wq, k_wk, k_wv, k_wo = jax.random.split(key, 6)

    # Deterministic parameter init (uniform +-1/sqrt(d_model), like nn.Linear).
    bound = 1.0 / math.sqrt(D_MODEL)
    wq = jax.random.uniform(k_wq, (D_MODEL, D_MODEL), jnp.float32, -bound, bound)
    wk = jax.random.uniform(k_wk, (D_MODEL, D_MODEL), jnp.float32, -bound, bound)
    wv = jax.random.uniform(k_wv, (D_MODEL, D_MODEL), jnp.float32, -bound, bound)
    wo = jax.random.uniform(k_wo, (D_MODEL, D_MODEL), jnp.float32, -bound, bound)

    x = jax.random.normal(k_x, (BATCH, SEQ, D_MODEL), jnp.float32)

    # Self-attention (K=None, V=None in the PyTorch forward -> K=V=Q).
    out_self = jax.block_until_ready(
        multi_head_attention(x, None, None, wq, wk, wv, wo))
    ref_self = mha_reference(x, x, x, wq, wk, wv, wo)
    assert out_self.shape == (BATCH, SEQ, D_MODEL)
    # Tolerance slightly relaxed vs. strict f32 for the approx-EUP reciprocal
    # (Newton-refined, so actual error is well below this).
    assert jnp.allclose(out_self, ref_self, atol=5e-4, rtol=5e-4), \
        "self-attention mismatch vs reference"

    # Cross-attention (distinct K/V source, as allowed by the module forward).
    kv = jax.random.normal(k_kv, (BATCH, SEQ, D_MODEL), jnp.float32)
    out_cross = jax.block_until_ready(
        multi_head_attention(x, kv, kv, wq, wk, wv, wo))
    ref_cross = mha_reference(x, kv, kv, wq, wk, wv, wo)
    assert jnp.allclose(out_cross, ref_cross, atol=5e-4, rtol=5e-4), \
        "cross-attention mismatch vs reference"

    print("KERNEL_OK")
</pallas_src>

<mosaic_0001>
module attributes {stable_mosaic.version = 11 : i64} {
  func.func @mha_self_kernel(%arg0: i32, %arg1: memref<2x8x32xf32, #tpu.memory_space<vmem>>, %arg2: memref<32x96xf32, #tpu.memory_space<vmem>>, %arg3: memref<32x32xf32, #tpu.memory_space<vmem>>, %arg4: memref<2x8x32xf32, #tpu.memory_space<vmem>>) attributes {dimension_semantics = [#tpu.dimension_semantics<arbitrary>], iteration_bounds = array<i64: 1>, scalar_prefetch = 0 : i64, scratch_operands = 0 : i64, tpu.core_type = #tpu.core_type<tc>, window_params = [{pipeline_mode = #tpu.pipeline_mode<synchronous>, transform_indices = @transform_0, window_bounds = array<i64: 2, 8, 32>}, {pipeline_mode = #tpu.pipeline_mode<synchronous>, transform_indices = @transform_1, window_bounds = array<i64: 32, 96>}, {pipeline_mode = #tpu.pipeline_mode<synchronous>, transform_indices = @transform_2, window_bounds = array<i64: 32, 32>}, {pipeline_mode = #tpu.pipeline_mode<synchronous>, transform_indices = @transform_3, window_bounds = array<i64: 2, 8, 32>}]} {
    %c0 = arith.constant 0 : index
    %c0_0 = arith.constant 0 : index
    %c0_1 = arith.constant 0 : index
    %0 = vector.load %arg1[%c0, %c0_0, %c0_1] : memref<2x8x32xf32, #tpu.memory_space<vmem>>, vector<2x8x32xf32>
    %1 = vector.shape_cast %0 : vector<2x8x32xf32> to vector<16x32xf32>
    %c0_2 = arith.constant 0 : index
    %c0_3 = arith.constant 0 : index
    %2 = vector.load %arg2[%c0_2, %c0_3] : memref<32x96xf32, #tpu.memory_space<vmem>>, vector<32x96xf32>
    %cst = arith.constant dense<0.000000e+00> : vector<16x96xf32>
    %3 = tpu.matmul %1, %2, %cst {dimension_numbers = #tpu.dot_dimension_numbers<[1], [0], [0], [1], [0, 0, 1, 1], [], []>} : vector<16x32xf32>, vector<32x96xf32>, vector<16x96xf32> -> vector<16x96xf32>
    %4 = vector.shape_cast %3 : vector<16x96xf32> to vector<2x8x96xf32>
    %5 = vector.extract_strided_slice %4 {offsets = [0, 0, 0], sizes = [2, 8, 32], strides = [1, 1, 1]} : vector<2x8x96xf32> to vector<2x8x32xf32>
    %6 = vector.extract_strided_slice %4 {offsets = [0, 0, 32], sizes = [2, 8, 32], strides = [1, 1, 1]} : vector<2x8x96xf32> to vector<2x8x32xf32>
    %7 = vector.extract_strided_slice %4 {offsets = [0, 0, 64], sizes = [2, 8, 32], strides = [1, 1, 1]} : vector<2x8x96xf32> to vector<2x8x32xf32>
    %c0_4 = arith.constant 0 : index
    %c0_5 = arith.constant 0 : index
    %8 = vector.load %arg3[%c0_4, %c0_5] : memref<32x32xf32, #tpu.memory_space<vmem>>, vector<32x32xf32>
    %9 = vector.extract_strided_slice %5 {offsets = [0, 0, 0], sizes = [2, 8, 8], strides = [1, 1, 1]} : vector<2x8x32xf32> to vector<2x8x8xf32>
    %10 = vector.extract_strided_slice %6 {offsets = [0, 0, 0], sizes = [2, 8, 8], strides = [1, 1, 1]} : vector<2x8x32xf32> to vector<2x8x8xf32>
    %11 = vector.extract_strided_slice %7 {offsets = [0, 0, 0], sizes = [2, 8, 8], strides = [1, 1, 1]} : vector<2x8x32xf32> to vector<2x8x8xf32>
    "tpu.trace_start"() <{level = 10 : i32, message = "bqd,bkd->bqk"}> : () -> ()
    %cst_6 = arith.constant dense<0.000000e+00> : vector<2x8x8xf32>
    %12 = tpu.matmul %9, %10, %cst_6 {dimension_numbers = #tpu.dot_dimension_numbers<[2], [2], [1], [1], [0, 0, 0, 1, 1, 1], [0], [0]>} : vector<2x8x8xf32>, vector<2x8x8xf32>, vector<2x8x8xf32> -> vector<2x8x8xf32>
    "tpu.trace_stop"() : () -> ()
    %cst_7 = arith.constant 0.353553385 : f32
    %13 = vector.broadcast %cst_7 : f32 to vector<2x8x8xf32>
    %14 = arith.mulf %12, %13 : vector<2x8x8xf32>
    %cst_8 = arith.constant dense<0xFF800000> : vector<2x8xf32>
    %15 = vector.multi_reduction <maximumf>, %14, %cst_8 [2] : vector<2x8x8xf32> to vector<2x8xf32>
    %16 = vector.shape_cast %15 : vector<2x8xf32> to vector<2x8x1xf32>
    %17 = vector.broadcast %16 : vector<2x8x1xf32> to vector<2x8x8xf32>
    %18 = arith.subf %14, %17 : vector<2x8x8xf32>
    %19 = math.exp %18 : vector<2x8x8xf32>
    %cst_9 = arith.constant dense<0.000000e+00> : vector<2x8xf32>
    %20 = vector.multi_reduction <add>, %19, %cst_9 [2] : vector<2x8x8xf32> to vector<2x8xf32>
    %21 = vector.shape_cast %20 : vector<2x8xf32> to vector<2x8x1xf32>
    %22 = tpu.reciprocal %21 {approx = true} : vector<2x8x1xf32> -> vector<2x8x1xf32>
    %23 = arith.mulf %21, %22 : vector<2x8x1xf32>
    %cst_10 = arith.constant 2.000000e+00 : f32
    %24 = vector.broadcast %cst_10 : f32 to vector<2x8x1xf32>
    %25 = arith.subf %24, %23 : vector<2x8x1xf32>
    %26 = arith.mulf %22, %25 : vector<2x8x1xf32>
    %27 = vector.broadcast %26 : vector<2x8x1xf32> to vector<2x8x8xf32>
    %28 = arith.mulf %19, %27 : vector<2x8x8xf32>
    "tpu.trace_start"() <{level = 10 : i32, message = "bqk,bkd->bqd"}> : () -> ()
    %cst_11 = arith.constant dense<0.000000e+00> : vector<2x8x8xf32>
    %29 = tpu.matmul %28, %11, %cst_11 {dimension_numbers = #tpu.dot_dimension_numbers<[2], [1], [1], [2], [0, 0, 0, 1, 1, 2], [0], [0]>} : vector<2x8x8xf32>, vector<2x8x8xf32>, vector<2x8x8xf32> -> vector<2x8x8xf32>
    "tpu.trace_stop"() : () -> ()
    %30 = vector.extract_strided_slice %5 {offsets = [0, 0, 8], sizes = [2, 8, 8], strides = [1, 1, 1]} : vector<2x8x32xf32> to vector<2x8x8xf32>
    %31 = vector.extract_strided_slice %6 {offsets = [0, 0, 8], sizes = [2, 8, 8], strides = [1, 1, 1]} : vector<2x8x32xf32> to vector<2x8x8xf32>
    %32 = vector.extract_strided_slice %7 {offsets = [0, 0, 8], sizes = [2, 8, 8], strides = [1, 1, 1]} : vector<2x8x32xf32> to vector<2x8x8xf32>
    "tpu.trace_start"() <{level = 10 : i32, message = "bqd,bkd->bqk"}> : () -> ()
    %cst_12 = arith.constant dense<0.000000e+00> : vector<2x8x8xf32>
    %33 = tpu.matmul %30, %31, %cst_12 {dimension_numbers = #tpu.dot_dimension_numbers<[2], [2], [1], [1], [0, 0, 0, 1, 1, 1], [0], [0]>} : vector<2x8x8xf32>, vector<2x8x8xf32>, vector<2x8x8xf32> -> vector<2x8x8xf32>
    "tpu.trace_stop"() : () -> ()
    %cst_13 = arith.constant 0.353553385 : f32
    %34 = vector.broadcast %cst_13 : f32 to vector<2x8x8xf32>
    %35 = arith.mulf %33, %34 : vector<2x8x8xf32>
    %cst_14 = arith.constant dense<0xFF800000> : vector<2x8xf32>
    %36 = vector.multi_reduction <maximumf>, %35, %cst_14 [2] : vector<2x8x8xf32> to vector<2x8xf32>
    %37 = vector.shape_cast %36 : vector<2x8xf32> to vector<2x8x1xf32>
    %38 = vector.broadcast %37 : vector<2x8x1xf32> to vector<2x8x8xf32>
    %39 = arith.subf %35, %38 : vector<2x8x8xf32>
    %40 = math.exp %39 : vector<2x8x8xf32>
    %cst_15 = arith.constant dense<0.000000e+00> : vector<2x8xf32>
    %41 = vector.multi_reduction <add>, %40, %cst_15 [2] : vector<2x8x8xf32> to vector<2x8xf32>
    %42 = vector.shape_cast %41 : vector<2x8xf32> to vector<2x8x1xf32>
    %43 = tpu.reciprocal %42 {approx = true} : vector<2x8x1xf32> -> vector<2x8x1xf32>
    %44 = arith.mulf %42, %43 : vector<2x8x1xf32>
    %cst_16 = arith.constant 2.000000e+00 : f32
    %45 = vector.broadcast %cst_16 : f32 to vector<2x8x1xf32>
    %46 = arith.subf %45, %44 : vector<2x8x1xf32>
    %47 = arith.mulf %43, %46 : vector<2x8x1xf32>
    %48 = vector.broadcast %47 : vector<2x8x1xf32> to vector<2x8x8xf32>
    %49 = arith.mulf %40, %48 : vector<2x8x8xf32>
    "tpu.trace_start"() <{level = 10 : i32, message = "bqk,bkd->bqd"}> : () -> ()
    %cst_17 = arith.constant dense<0.000000e+00> : vector<2x8x8xf32>
    %50 = tpu.matmul %49, %32, %cst_17 {dimension_numbers = #tpu.dot_dimension_numbers<[2], [1], [1], [2], [0, 0, 0, 1, 1, 2], [0], [0]>} : vector<2x8x8xf32>, vector<2x8x8xf32>, vector<2x8x8xf32> -> vector<2x8x8xf32>
    "tpu.trace_stop"() : () -> ()
    %51 = vector.extract_strided_slice %5 {offsets = [0, 0, 16], sizes = [2, 8, 8], strides = [1, 1, 1]} : vector<2x8x32xf32> to vector<2x8x8xf32>
    %52 = vector.extract_strided_slice %6 {offsets = [0, 0, 16], sizes = [2, 8, 8], strides = [1, 1, 1]} : vector<2x8x32xf32> to vector<2x8x8xf32>
    %53 = vector.extract_strided_slice %7 {offsets = [0, 0, 16], sizes = [2, 8, 8], strides = [1, 1, 1]} : vector<2x8x32xf32> to vector<2x8x8xf32>
    "tpu.trace_start"() <{level = 10 : i32, message = "bqd,bkd->bqk"}> : () -> ()
    %cst_18 = arith.constant dense<0.000000e+00> : vector<2x8x8xf32>
    %54 = tpu.matmul %51, %52, %cst_18 {dimension_numbers = #tpu.dot_dimension_numbers<[2], [2], [1], [1], [0, 0, 0, 1, 1, 1], [0], [0]>} : vector<2x8x8xf32>, vector<2x8x8xf32>, vector<2x8x8xf32> -> vector<2x8x8xf32>
    "tpu.trace_stop"() : () -> ()
    %cst_19 = arith.constant 0.353553385 : f32
    %55 = vector.broadcast %cst_19 : f32 to vector<2x8x8xf32>
    %56 = arith.mulf %54, %55 : vector<2x8x8xf32>
    %cst_20 = arith.constant dense<0xFF800000> : vector<2x8xf32>
    %57 = vector.multi_reduction <maximumf>, %56, %cst_20 [2] : vector<2x8x8xf32> to vector<2x8xf32>
    %58 = vector.shape_cast %57 : vector<2x8xf32> to vector<2x8x1xf32>
    %59 = vector.broadcast %58 : vector<2x8x1xf32> to vector<2x8x8xf32>
    %60 = arith.subf %56, %59 : vector<2x8x8xf32>
    %61 = math.exp %60 : vector<2x8x8xf32>
    %cst_21 = arith.constant dense<0.000000e+00> : vector<2x8xf32>
    %62 = vector.multi_reduction <add>, %61, %cst_21 [2] : vector<2x8x8xf32> to vector<2x8xf32>
    %63 = vector.shape_cast %62 : vector<2x8xf32> to vector<2x8x1xf32>
    %64 = tpu.reciprocal %63 {approx = true} : vector<2x8x1xf32> -> vector<2x8x1xf32>
    %65 = arith.mulf %63, %64 : vector<2x8x1xf32>
    %cst_22 = arith.constant 2.000000e+00 : f32
    %66 = vector.broadcast %cst_22 : f32 to vector<2x8x1xf32>
    %67 = arith.subf %66, %65 : vector<2x8x1xf32>
    %68 = arith.mulf %64, %67 : vector<2x8x1xf32>
    %69 = vector.broadcast %68 : vector<2x8x1xf32> to vector<2x8x8xf32>
    %70 = arith.mulf %61, %69 : vector<2x8x8xf32>
    "tpu.trace_start"() <{level = 10 : i32, message = "bqk,bkd->bqd"}> : () -> ()
    %cst_23 = arith.constant dense<0.000000e+00> : vector<2x8x8xf32>
    %71 = tpu.matmul %70, %53, %cst_23 {dimension_numbers = #tpu.dot_dimension_numbers<[2], [1], [1], [2], [0, 0, 0, 1, 1, 2], [0], [0]>} : vector<2x8x8xf32>, vector<2x8x8xf32>, vector<2x8x8xf32> -> vector<2x8x8xf32>
    "tpu.trace_stop"() : () -> ()
    %72 = vector.extract_strided_slice %5 {offsets = [0, 0, 24], sizes = [2, 8, 8], strides = [1, 1, 1]} : vector<2x8x32xf32> to vector<2x8x8xf32>
    %73 = vector.extract_strided_slice %6 {offsets = [0, 0, 24], sizes = [2, 8, 8], strides = [1, 1, 1]} : vector<2x8x32xf32> to vector<2x8x8xf32>
    %74 = vector.extract_strided_slice %7 {offsets = [0, 0, 24], sizes = [2, 8, 8], strides = [1, 1, 1]} : vector<2x8x32xf32> to vector<2x8x8xf32>
    "tpu.trace_start"() <{level = 10 : i32, message = "bqd,bkd->bqk"}> : () -> ()
    %cst_24 = arith.constant dense<0.000000e+00> : vector<2x8x8xf32>
    %75 = tpu.matmul %72, %73, %cst_24 {dimension_numbers = #tpu.dot_dimension_numbers<[2], [2], [1], [1], [0, 0, 0, 1, 1, 1], [0], [0]>} : vector<2x8x8xf32>, vector<2x8x8xf32>, vector<2x8x8xf32> -> vector<2x8x8xf32>
    "tpu.trace_stop"() : () -> ()
    %cst_25 = arith.constant 0.353553385 : f32
    %76 = vector.broadcast %cst_25 : f32 to vector<2x8x8xf32>
    %77 = arith.mulf %75, %76 : vector<2x8x8xf32>
    %cst_26 = arith.constant dense<0xFF800000> : vector<2x8xf32>
    %78 = vector.multi_reduction <maximumf>, %77, %cst_26 [2] : vector<2x8x8xf32> to vector<2x8xf32>
    %79 = vector.shape_cast %78 : vector<2x8xf32> to vector<2x8x1xf32>
    %80 = vector.broadcast %79 : vector<2x8x1xf32> to vector<2x8x8xf32>
    %81 = arith.subf %77, %80 : vector<2x8x8xf32>
    %82 = math.exp %81 : vector<2x8x8xf32>
    %cst_27 = arith.constant dense<0.000000e+00> : vector<2x8xf32>
    %83 = vector.multi_reduction <add>, %82, %cst_27 [2] : vector<2x8x8xf32> to vector<2x8xf32>
    %84 = vector.shape_cast %83 : vector<2x8xf32> to vector<2x8x1xf32>
    %85 = tpu.reciprocal %84 {approx = true} : vector<2x8x1xf32> -> vector<2x8x1xf32>
    %86 = arith.mulf %84, %85 : vector<2x8x1xf32>
    %cst_28 = arith.constant 2.000000e+00 : f32
    %87 = vector.broadcast %cst_28 : f32 to vector<2x8x1xf32>
    %88 = arith.subf %87, %86 : vector<2x8x1xf32>
    %89 = arith.mulf %85, %88 : vector<2x8x1xf32>
    %90 = vector.broadcast %89 : vector<2x8x1xf32> to vector<2x8x8xf32>
    %91 = arith.mulf %82, %90 : vector<2x8x8xf32>
    "tpu.trace_start"() <{level = 10 : i32, message = "bqk,bkd->bqd"}> : () -> ()
    %cst_29 = arith.constant dense<0.000000e+00> : vector<2x8x8xf32>
    %92 = tpu.matmul %91, %74, %cst_29 {dimension_numbers = #tpu.dot_dimension_numbers<[2], [1], [1], [2], [0, 0, 0, 1, 1, 2], [0], [0]>} : vector<2x8x8xf32>, vector<2x8x8xf32>, vector<2x8x8xf32> -> vector<2x8x8xf32>
    "tpu.trace_stop"() : () -> ()
    %93 = tpu.concatenate %29, %50, %71, %92 in 2 : vector<2x8x8xf32>, vector<2x8x8xf32>, vector<2x8x8xf32>, vector<2x8x8xf32> -> vector<2x8x32xf32>
    %94 = vector.shape_cast %93 : vector<2x8x32xf32> to vector<16x32xf32>
    %cst_30 = arith.constant dense<0.000000e+00> : vector<16x32xf32>
    %95 = tpu.matmul %94, %8, %cst_30 {dimension_numbers = #tpu.dot_dimension_numbers<[1], [0], [0], [1], [0, 0, 1, 1], [], []>} : vector<16x32xf32>, vector<32x32xf32>, vector<16x32xf32> -> vector<16x32xf32>
    %96 = vector.shape_cast %95 : vector<16x32xf32> to vector<2x8x32xf32>
    %c0_31 = arith.constant 0 : index
    %c0_32 = arith.constant 0 : index
    %c0_33 = arith.constant 0 : index
    %97 = vector.load %arg4[%c0_31, %c0_32, %c0_33] : memref<2x8x32xf32, #tpu.memory_space<vmem>>, vector<2x8x32xf32>
    tpu.vector_store %arg4[%c0_31, %c0_32, %c0_33], %96 {strides = array<i32>} : memref<2x8x32xf32, #tpu.memory_space<vmem>>, vector<2x8x32xf32>,
    return
  }
  func.func @transform_0(%arg0: i32) -> (i32, i32, i32) {
    %c0_i32 = arith.constant 0 : i32
    %c0_i32_0 = arith.constant 0 : i32
    %c0_i32_1 = arith.constant 0 : i32
    %c0_i32_2 = arith.constant 0 : i32
    return %c0_i32, %c0_i32_0, %c0_i32_1 : i32, i32, i32
  }
  func.func @transform_1(%arg0: i32) -> (i32, i32) {
    %c0_i32 = arith.constant 0 : i32
    %c0_i32_0 = arith.constant 0 : i32
    %c0_i32_1 = arith.constant 0 : i32
    return %c0_i32, %c0_i32_0 : i32, i32
  }
  func.func @transform_2(%arg0: i32) -> (i32, i32) {
    %c0_i32 = arith.constant 0 : i32
    %c0_i32_0 = arith.constant 0 : i32
    %c0_i32_1 = arith.constant 0 : i32
    return %c0_i32, %c0_i32_0 : i32, i32
  }
  func.func @transform_3(%arg0: i32) -> (i32, i32, i32) {
    %c0_i32 = arith.constant 0 : i32
    %c0_i32_0 = arith.constant 0 : i32
    %c0_i32_1 = arith.constant 0 : i32
    %c0_i32_2 = arith.constant 0 : i32
    return %c0_i32, %c0_i32_0, %c0_i32_1 : i32, i32, i32
  }
}

</mosaic_0001>

<llo_original>
// kernel: tpu_custom_call.1
$region0: #{tpu_custom_call.1}
  #allocation0 [shape = 'u32[]', space=smem, size = 0x4, offset = 0x4, fixed_abs, tag = 'smem constant byte address 0x4 - core index']
  #allocation1 [shape = 'u32[144,128]{1,0:T(1,128)}', space=vmem, size = 0x12000, scoped, tag = 'internal scratch']
  %s0 = inlined_call_operand.hbm [shape: f32[2,8,32], index: 0, kind: input, shape index: {}]
  %s1 = inlined_call_operand.hbm [shape: f32[32,96], index: 1, kind: input, shape index: {}]
  %s2 = inlined_call_operand.hbm [shape: f32[32,32], index: 2, kind: input, shape index: {}]
  %s3 = inlined_call_operand.hbm [shape: f32[2,8,32], index: 3, kind: output, shape index: {}]
  %s4 = sld [smem:[#allocation0]]
  $region34: #{tpu_custom_call.1} parent=0
    _
  %s6 = ssub.s32 1, %s4
  %s7 = scalar_select 0, %s6, %s4
  $region1: #{tpu_custom_call.1} parent=0
    #allocation2 [shape = 'u8[8192]{0}', space=vmem, size = 0x2000, scoped, tag = 'input window, operand 0, single buffered']
    #allocation3 [shape = 's32[1]{0}', space=sflag, size = 0x4, scoped, tag = 'scoped memory for tpu_custom_call.1']
    #allocation4 [shape = 's32[1]{0}', space=sflag, size = 0x4, scoped, tag = 'scoped memory for tpu_custom_call.1']
    #allocation5 [shape = 'u8[16384]{0}', space=vmem, size = 0x4000, scoped, tag = 'input window, operand 1, single buffered']
    #allocation6 [shape = 's32[1]{0}', space=sflag, size = 0x4, scoped, tag = 'scoped memory for tpu_custom_call.1']
    #allocation7 [shape = 'u8[16384]{0}', space=vmem, size = 0x4000, scoped, tag = 'input window, operand 2, single buffered']
    #allocation8 [shape = 'u8[8192]{0}', space=vmem, size = 0x2000, scoped, tag = 'output window, operand 0, single buffered']
    %8 = vsyncpa [#allocation3], 0
    %9 = vsyncpa [#allocation6], 0
    %10 = vsyncpa [#allocation4], 0
    // Predicated region
    $region2: #{tpu_custom_call.1} parent=1 // pred_check
      _
    $region3: #{tpu_custom_call.1} parent=1 // pred_check_branch
      %12 = sbr.rel (0) target = $region5
    $region4: #{tpu_custom_call.1} parent=1 // pred_region
      %s14 = ssub.s32 256, 256
      %15 = vsyncadd [#allocation3], %s14
      %s16 = sshll.u32 [#allocation2], 4
      %s17 = int_to_ptr.vmem [resolvable:$true] %s16
      %22 = dma.hbm_to_vmem [thread:$0]  %s0, 256, %s17, [#allocation3], 128, 128, 8
    $region5: #{tpu_custom_call.1} parent=1 // pred_fallthru
      _
    // Predicated region
    $region6: #{tpu_custom_call.1} parent=1 // pred_check
      _
    $region7: #{tpu_custom_call.1} parent=1 // pred_check_branch
      %24 = sbr.rel (0) target = $region9
    $region8: #{tpu_custom_call.1} parent=1 // pred_region
      %s26 = ssub.s32 512, 512
      %27 = vsyncadd [#allocation6], %s26
      %s28 = sshll.u32 [#allocation5], 4
      %s29 = int_to_ptr.vmem [resolvable:$true] %s28
      %34 = dma.hbm_to_vmem [thread:$0]  %s1, 512, %s29, [#allocation6], 128, 128, 8
    $region9: #{tpu_custom_call.1} parent=1 // pred_fallthru
      _
    // Predicated region
    $region10: #{tpu_custom_call.1} parent=1 // pred_check
      _
    $region11: #{tpu_custom_call.1} parent=1 // pred_check_branch
      %36 = sbr.rel (0) target = $region13
    $region12: #{tpu_custom_call.1} parent=1 // pred_region
      %s38 = ssub.s32 512, 512
      %39 = vsyncadd [#allocation6], %s38
      %s40 = sshll.u32 [#allocation7], 4
      %s41 = int_to_ptr.vmem [resolvable:$true] %s40
      %46 = dma.hbm_to_vmem [thread:$0]  %s2, 512, %s41, [#allocation6], 128, 128, 8
    $region13: #{tpu_custom_call.1} parent=1 // pred_fallthru
      _
    // Predicated region
    $region14: #{tpu_custom_call.1} parent=1 // pred_check
      _
    $region15: #{tpu_custom_call.1} parent=1 // pred_check_branch
      %48 = sbr.rel (0) target = $region17
    $region16: #{tpu_custom_call.1} parent=1 // pred_region
      %49 = dma.done [#allocation3], 256
    $region17: #{tpu_custom_call.1} parent=1 // pred_fallthru
      _
    // Predicated region
    $region18: #{tpu_custom_call.1} parent=1 // pred_check
      _
    $region19: #{tpu_custom_call.1} parent=1 // pred_check_branch
      %51 = sbr.rel (0) target = $region21
    $region20: #{tpu_custom_call.1} parent=1 // pred_region
      %52 = dma.done [#allocation6], 512
    $region21: #{tpu_custom_call.1} parent=1 // pred_fallthru
      _
    // Predicated region
    $region22: #{tpu_custom_call.1} parent=1 // pred_check
      _
    $region23: #{tpu_custom_call.1} parent=1 // pred_check_branch
      %54 = sbr.rel (0) target = $region25
    $region24: #{tpu_custom_call.1} parent=1 // pred_region
      %55 = dma.done [#allocation6], 512
    $region25: #{tpu_custom_call.1} parent=1 // pred_fallthru
      _
    %v56 = vld [vmem:[#allocation2] sm:$0xff]
    %v57 = vld [vmem:[#allocation2 + $0x8] sm:$0xff]
    %v58 = vld [vmem:[#allocation5] sm:$0xff]
    %v59 = vld [vmem:[#allocation5 + $0x8] sm:$0xff]
    %v60 = vld [vmem:[#allocation5 + $0x10] sm:$0xff]
    %v61 = vld [vmem:[#allocation5 + $0x18] sm:$0xff]
    %vm62 = vcmask 261120
    %v64 = vsel %vm62, %v56, 0
    %v67 = vsel %vm62, %v57, 0
    %69 = vmatprep.subr.mxu0 0.0
    %70 = vmatpush1.msra.mxu0 %v58
    %71 = vmatprep.subr.mxu0 0.0
    %72 = vmatpush1.msra.mxu0 %v59
    %73 = vmatprep.subr.mxu0 0.0
    %74 = vmatpush1.msra.mxu0 %v60
    %75 = vmatprep.subr.mxu0 0.0
    %76 = vmatpush1.msra.mxu0 %v61
    %77 = vmatprep.subr.mxu0 0.0
    %78 = vmatpush1.msra.mxu0 0.0
    %79 = vmatprep.subr.mxu0 0.0
    %80 = vmatpush1.msra.mxu0 0.0
    %81 = vmatprep.subr.mxu0 0.0
    %82 = vmatpush1.msra.mxu0 0.0
    %83 = vmatprep.subr.mxu0 0.0
    %84 = vmatpush1.msra.mxu0 0.0
    %85 = vmatprep.subr.mxu0 0.0
    %86 = vmatpush1.msra.mxu0 0.0
    %87 = vmatprep.subr.mxu0 0.0
    %88 = vmatpush1.msra.mxu0 0.0
    %89 = vmatprep.subr.mxu0 0.0
    %90 = vmatpush1.msra.mxu0 0.0
    %91 = vmatprep.subr.mxu0 0.0
    %92 = vmatpush1.msra.mxu0 0.0
    %93 = vmatprep.subr.mxu0 0.0
    %94 = vmatpush1.msra.mxu0 0.0
    %95 = vmatprep.subr.mxu0 0.0
    %96 = vmatpush1.msra.mxu0 0.0
    %97 = vmatprep.subr.mxu0 0.0
    %98 = vmatpush1.msra.mxu0 0.0
    %99 = vmatprep.subr.mxu0 0.0
    %100 = vmatpush1.msra.mxu0 0.0
    %101 = vmatprep.subr.mxu0 0.0
    %102 = vmatpush1.msra.mxu0 0.0
    %103 = vmatprep.subr.mxu0 0.0
    %104 = vmatpush1.msra.mxu0 0.0
    %105 = vmatprep.subr.mxu0 0.0
    %106 = vmatpush1.msra.mxu0 0.0
    %107 = vmatprep.subr.mxu0 0.0
    %108 = vmatpush1.msra.mxu0 0.0
    %109 = vmatprep.subr.mxu0 0.0
    %110 = vmatpush1.msra.mxu0 0.0
    %111 = vmatprep.subr.mxu0 0.0
    %112 = vmatpush1.msra.mxu0 0.0
    %113 = vmatprep.subr.mxu0 0.0
    %114 = vmatpush1.msra.mxu0 0.0
    %115 = vmatprep.subr.mxu0 0.0
    %116 = vmatpush1.msra.mxu0 0.0
    %117 = vmatprep.subr.mxu0 0.0
    %118 = vmatpush1.msra.mxu0 0.0
    %119 = vmatprep.subr.mxu0 0.0
    %120 = vmatpush1.msra.mxu0 0.0
    %121 = vmatprep.subr.mxu0 0.0
    %122 = vmatpush1.msra.mxu0 0.0
    %123 = vmatprep.subr.mxu0 0.0
    %124 = vmatpush1.msra.mxu0 0.0
    %125 = vmatprep.subr.mxu0 0.0
    %126 = vmatpush1.msra.mxu0 0.0
    %127 = vmatprep.subr.mxu0 0.0
    %128 = vmatpush1.msra.mxu0 0.0
    %129 = vmatprep.subr.mxu0 0.0
    %130 = vmatpush1.msra.mxu0 0.0
    %131 = vmatprep.subr.mxu0 0.0
    %132 = vmatpush1.msra.mxu0 0.0
    %133 = vmatprep.mubr.f32.mxu0 0.0
    %134 = vmatmul.mubr.f32.gmra.mrb[0].mxu0 %v64
    %v135 = vpop.f32.mrb[0].mxu0
    %v136 = vadd.f32 0.0, %v135
    %v137 = vpop.f32.mrb[0].mxu0
    %138 = vmatprep.mubr.f32.mxu0 0.0
    %139 = vmatmul.mubr.f32.gmra.mrb[0].mxu0 %v67
    %v140 = vpop.f32.mrb[0].mxu0
    %v141 = vadd.f32 0.0, %v140
    %v142 = vpop.f32.mrb[0].mxu0
    %143 = vdwg.mxu0
    %v144 = vld [vmem:[#allocation7] sm:$0xff]
    %v145 = vld [vmem:[#allocation7 + $0x8] sm:$0xff]
    %v146 = vld [vmem:[#allocation7 + $0x10] sm:$0xff]
    %v147 = vld [vmem:[#allocation7 + $0x18] sm:$0xff]
    %149 = vrot.lane.b32.xlu0 %v136, 96
    %v150 = vpop.permute.xlu0 %149
    %vm151 = vcmask 64512
    %v152 = vsel %vm151, %v136, 0
    %v154 = vsel %vm151, %v150, 0
    %156 = vmatprep.subr.mxu0 0.0
    %157 = vmatpush1.xpose.msra.mxu0 %v154
    %158 = vmatprep.subr.mxu0 0.0
    %159 = vmatpush1.xpose.msra.mxu0 0.0
    %160 = vmatprep.subr.mxu0 0.0
    %161 = vmatpush1.xpose.msra.mxu0 0.0
    %162 = vmatprep.subr.mxu0 0.0
    %163 = vmatpush1.xpose.msra.mxu0 0.0
    %164 = vmatprep.subr.mxu0 0.0
    %165 = vmatpush1.xpose.msra.mxu0 0.0
    %166 = vmatprep.subr.mxu0 0.0
    %167 = vmatpush1.xpose.msra.mxu0 0.0
    %168 = vmatprep.subr.mxu0 0.0
    %169 = vmatpush1.xpose.msra.mxu0 0.0
    %170 = vmatprep.subr.mxu0 0.0
    %171 = vmatpush1.xpose.msra.mxu0 0.0
    %172 = vmatprep.subr.mxu0 0.0
    %173 = vmatpush1.xpose.msra.mxu0 0.0
    %174 = vmatprep.subr.mxu0 0.0
    %175 = vmatpush1.xpose.msra.mxu0 0.0
    %176 = vmatprep.subr.mxu0 0.0
    %177 = vmatpush1.xpose.msra.mxu0 0.0
    %178 = vmatprep.subr.mxu0 0.0
    %179 = vmatpush1.xpose.msra.mxu0 0.0
    %180 = vmatprep.subr.mxu0 0.0
    %181 = vmatpush1.xpose.msra.mxu0 0.0
    %182 = vmatprep.subr.mxu0 0.0
    %183 = vmatpush1.xpose.msra.mxu0 0.0
    %184 = vmatprep.subr.mxu0 0.0
    %185 = vmatpush1.xpose.msra.mxu0 0.0
    %186 = vmatprep.subr.mxu0 0.0
    %187 = vmatpush1.xpose.msra.mxu0 0.0
    %188 = vmatprep.subr.mxu0 0.0
    %189 = vmatpush1.xpose.msra.mxu0 0.0
    %190 = vmatprep.subr.mxu0 0.0
    %191 = vmatpush1.xpose.msra.mxu0 0.0
    %192 = vmatprep.subr.mxu0 0.0
    %193 = vmatpush1.xpose.msra.mxu0 0.0
    %194 = vmatprep.subr.mxu0 0.0
    %195 = vmatpush1.xpose.msra.mxu0 0.0
    %196 = vmatprep.subr.mxu0 0.0
    %197 = vmatpush1.xpose.msra.mxu0 0.0
    %198 = vmatprep.subr.mxu0 0.0
    %199 = vmatpush1.xpose.msra.mxu0 0.0
    %200 = vmatprep.subr.mxu0 0.0
    %201 = vmatpush1.xpose.msra.mxu0 0.0
    %202 = vmatprep.subr.mxu0 0.0
    %203 = vmatpush1.xpose.msra.mxu0 0.0
    %204 = vmatprep.subr.mxu0 0.0
    %205 = vmatpush1.xpose.msra.mxu0 0.0
    %206 = vmatprep.subr.mxu0 0.0
    %207 = vmatpush1.xpose.msra.mxu0 0.0
    %208 = vmatprep.subr.mxu0 0.0
    %209 = vmatpush1.xpose.msra.mxu0 0.0
    %210 = vmatprep.subr.mxu0 0.0
    %211 = vmatpush1.xpose.msra.mxu0 0.0
    %212 = vmatprep.subr.mxu0 0.0
    %213 = vmatpush1.xpose.msra.mxu0 0.0
    %214 = vmatprep.subr.mxu0 0.0
    %215 = vmatpush1.xpose.msra.mxu0 0.0
    %216 = vmatprep.subr.mxu0 0.0
    %217 = vmatpush1.xpose.msra.mxu0 0.0
    %218 = vmatprep.subr.mxu0 0.0
    %219 = vmatpush1.xpose.msra.mxu0 0.0
    %220 = vmatprep.mubr.f32.mxu0 0.0
    %221 = vmatmul.mubr.f32.gmra.mrb[0].mxu0 %v152
    %v222 = vpop.f32.mrb[0].mxu0
    %v223 = vadd.f32 0.0, %v222
    %v224 = vpop.f32.mrb[0].mxu0
    %225 = vdwg.mxu0
    %227 = vrot.lane.b32.xlu0 %v141, 96
    %v228 = vpop.permute.xlu0 %227
    %v229 = vsel %vm151, %v141, 0
    %v231 = vsel %vm151, %v228, 0
    %233 = vmatprep.subr.mxu0 0.0
    %234 = vmatpush1.xpose.msra.mxu0 %v231
    %235 = vmatprep.subr.mxu0 0.0
    %236 = vmatpush1.xpose.msra.mxu0 0.0
    %237 = vmatprep.subr.mxu0 0.0
    %238 = vmatpush1.xpose.msra.mxu0 0.0
    %239 = vmatprep.subr.mxu0 0.0
    %240 = vmatpush1.xpose.msra.mxu0 0.0
    %241 = vmatprep.subr.mxu0 0.0
    %242 = vmatpush1.xpose.msra.mxu0 0.0
    %243 = vmatprep.subr.mxu0 0.0
    %244 = vmatpush1.xpose.msra.mxu0 0.0
    %245 = vmatprep.subr.mxu0 0.0
    %246 = vmatpush1.xpose.msra.mxu0 0.0
    %247 = vmatprep.subr.mxu0 0.0
    %248 = vmatpush1.xpose.msra.mxu0 0.0
    %249 = vmatprep.subr.mxu0 0.0
    %250 = vmatpush1.xpose.msra.mxu0 0.0
    %251 = vmatprep.subr.mxu0 0.0
    %252 = vmatpush1.xpose.msra.mxu0 0.0
    %253 = vmatprep.subr.mxu0 0.0
    %254 = vmatpush1.xpose.msra.mxu0 0.0
    %255 = vmatprep.subr.mxu0 0.0
    %256 = vmatpush1.xpose.msra.mxu0 0.0
    %257 = vmatprep.subr.mxu0 0.0
    %258 = vmatpush1.xpose.msra.mxu0 0.0
    %259 = vmatprep.subr.mxu0 0.0
    %260 = vmatpush1.xpose.msra.mxu0 0.0
    %261 = vmatprep.subr.mxu0 0.0
    %262 = vmatpush1.xpose.msra.mxu0 0.0
    %263 = vmatprep.subr.mxu0 0.0
    %264 = vmatpush1.xpose.msra.mxu0 0.0
    %265 = vmatprep.subr.mxu0 0.0
    %266 = vmatpush1.xpose.msra.mxu0 0.0
    %267 = vmatprep.subr.mxu0 0.0
    %268 = vmatpush1.xpose.msra.mxu0 0.0
    %269 = vmatprep.subr.mxu0 0.0
    %270 = vmatpush1.xpose.msra.mxu0 0.0
    %271 = vmatprep.subr.mxu0 0.0
    %272 = vmatpush1.xpose.msra.mxu0 0.0
    %273 = vmatprep.subr.mxu0 0.0
    %274 = vmatpush1.xpose.msra.mxu0 0.0
    %275 = vmatprep.subr.mxu0 0.0
    %276 = vmatpush1.xpose.msra.mxu0 0.0
    %277 = vmatprep.subr.mxu0 0.0
    %278 = vmatpush1.xpose.msra.mxu0 0.0
    %279 = vmatprep.subr.mxu0 0.0
    %280 = vmatpush1.xpose.msra.mxu0 0.0
    %281 = vmatprep.subr.mxu0 0.0
    %282 = vmatpush1.xpose.msra.mxu0 0.0
    %283 = vmatprep.subr.mxu0 0.0
    %284 = vmatpush1.xpose.msra.mxu0 0.0
    %285 = vmatprep.subr.mxu0 0.0
    %286 = vmatpush1.xpose.msra.mxu0 0.0
    %287 = vmatprep.subr.mxu0 0.0
    %288 = vmatpush1.xpose.msra.mxu0 0.0
    %289 = vmatprep.subr.mxu0 0.0
    %290 = vmatpush1.xpose.msra.mxu0 0.0
    %291 = vmatprep.subr.mxu0 0.0
    %292 = vmatpush1.xpose.msra.mxu0 0.0
    %293 = vmatprep.subr.mxu0 0.0
    %294 = vmatpush1.xpose.msra.mxu0 0.0
    %295 = vmatprep.subr.mxu0 0.0
    %296 = vmatpush1.xpose.msra.mxu0 0.0
    %297 = vmatprep.mubr.f32.mxu0 0.0
    %298 = vmatmul.mubr.f32.gmra.mrb[0].mxu0 %v229
    %v299 = vpop.f32.mrb[0].mxu0
    %v300 = vadd.f32 0.0, %v299
    %v301 = vpop.f32.mrb[0].mxu0
    %302 = vdwg.mxu0
    %v303 = vmul.f32 %v223, 0.35355338
    %v304 = vmul.f32 %v300, 0.35355338
    %v305 = vsel %vm151, %v303, -inf
    %306 = vmax.xlane.f32.xlu0 %v305
    %v307 = vpop.xlane.xlu0 %306
    %v308 = vsel %vm151, %v304, -inf
    %309 = vmax.xlane.f32.xlu0 %v308
    %v310 = vpop.xlane.xlu0 %309
    %v311 = vsub.f32 %v303, %v307
    %v312 = vsub.f32 %v304, %v310
    %v313 = vmul.f32 %v311, 1.442695
    %v314 = vpow.pop %v313
    %v315 = vmul.f32 %v312, 1.442695
    %v316 = vpow.pop %v315
    %v317 = vsel %vm151, %v314, 0.0
    %318 = vadd.xlane.f32.xlu0 %v317
    %v319 = vpop.xlane.xlu0 %318
    %v320 = vsel %vm151, %v316, 0.0
    %321 = vadd.xlane.f32.xlu0 %v320
    %v322 = vpop.xlane.xlu0 %321
    %v323 = vrcp.pop %v319
    %v324 = vrcp.pop %v322
    %v325 = vmul.f32 %v319, %v323
    %v326 = vmul.f32 %v322, %v324
    %v327 = vsub.f32 2.0, %v325
    %v328 = vsub.f32 2.0, %v326
    %v329 = vmul.f32 %v323, %v327
    %v330 = vmul.f32 %v324, %v328
    %v331 = vmul.f32 %v314, %v329
    %v332 = vmul.f32 %v316, %v330
    %333 = vrot.lane.b32.xlu0 %v136, 64
    %v334 = vpop.permute.xlu0 %333
    %v337 = vsel %vm151, %v331, 0
    %339 = vmatprep.subr.mxu0 0.0
    %340 = vmatpush1.msra.mxu0 %v334
    %341 = vmatprep.subr.mxu0 0.0
    %342 = vmatpush1.msra.mxu0 0.0
    %343 = vmatprep.subr.mxu0 0.0
    %344 = vmatpush1.msra.mxu0 0.0
    %345 = vmatprep.subr.mxu0 0.0
    %346 = vmatpush1.msra.mxu0 0.0
    %347 = vmatprep.subr.mxu0 0.0
    %348 = vmatpush1.msra.mxu0 0.0
    %349 = vmatprep.subr.mxu0 0.0
    %350 = vmatpush1.msra.mxu0 0.0
    %351 = vmatprep.subr.mxu0 0.0
    %352 = vmatpush1.msra.mxu0 0.0
    %353 = vmatprep.subr.mxu0 0.0
    %354 = vmatpush1.msra.mxu0 0.0
    %355 = vmatprep.subr.mxu0 0.0
    %356 = vmatpush1.msra.mxu0 0.0
    %357 = vmatprep.subr.mxu0 0.0
    %358 = vmatpush1.msra.mxu0 0.0
    %359 = vmatprep.subr.mxu0 0.0
    %360 = vmatpush1.msra.mxu0 0.0
    %361 = vmatprep.subr.mxu0 0.0
    %362 = vmatpush1.msra.mxu0 0.0
    %363 = vmatprep.subr.mxu0 0.0
    %364 = vmatpush1.msra.mxu0 0.0
    %365 = vmatprep.subr.mxu0 0.0
    %366 = vmatpush1.msra.mxu0 0.0
    %367 = vmatprep.subr.mxu0 0.0
    %368 = vmatpush1.msra.mxu0 0.0
    %369 = vmatprep.subr.mxu0 0.0
    %370 = vmatpush1.msra.mxu0 0.0
    %371 = vmatprep.subr.mxu0 0.0
    %372 = vmatpush1.msra.mxu0 0.0
    %373 = vmatprep.subr.mxu0 0.0
    %374 = vmatpush1.msra.mxu0 0.0
    %375 = vmatprep.subr.mxu0 0.0
    %376 = vmatpush1.msra.mxu0 0.0
    %377 = vmatprep.subr.mxu0 0.0
    %378 = vmatpush1.msra.mxu0 0.0
    %379 = vmatprep.subr.mxu0 0.0
    %380 = vmatpush1.msra.mxu0 0.0
    %381 = vmatprep.subr.mxu0 0.0
    %382 = vmatpush1.msra.mxu0 0.0
    %383 = vmatprep.subr.mxu0 0.0
    %384 = vmatpush1.msra.mxu0 0.0
    %385 = vmatprep.subr.mxu0 0.0
    %386 = vmatpush1.msra.mxu0 0.0
    %387 = vmatprep.subr.mxu0 0.0
    %388 = vmatpush1.msra.mxu0 0.0
    %389 = vmatprep.subr.mxu0 0.0
    %390 = vmatpush1.msra.mxu0 0.0
    %391 = vmatprep.subr.mxu0 0.0
    %392 = vmatpush1.msra.mxu0 0.0
    %393 = vmatprep.subr.mxu0 0.0
    %394 = vmatpush1.msra.mxu0 0.0
    %395 = vmatprep.subr.mxu0 0.0
    %396 = vmatpush1.msra.mxu0 0.0
    %397 = vmatprep.subr.mxu0 0.0
    %398 = vmatpush1.msra.mxu0 0.0
    %399 = vmatprep.subr.mxu0 0.0
    %400 = vmatpush1.msra.mxu0 0.0
    %401 = vmatprep.subr.mxu0 0.0
    %402 = vmatpush1.msra.mxu0 0.0
    %403 = vmatprep.mubr.f32.mxu0 0.0
    %404 = vmatmul.mubr.f32.gmra.mrb[0].mxu0 %v337
    %v405 = vpop.f32.mrb[0].mxu0
    %v406 = vadd.f32 0.0, %v405
    %v407 = vpop.f32.mrb[0].mxu0
    %408 = vdwg.mxu0
    %409 = vrot.lane.b32.xlu0 %v141, 64
    %v410 = vpop.permute.xlu0 %409
    %v413 = vsel %vm151, %v332, 0
    %415 = vmatprep.subr.mxu0 0.0
    %416 = vmatpush1.msra.mxu0 %v410
    %417 = vmatprep.subr.mxu0 0.0
    %418 = vmatpush1.msra.mxu0 0.0
    %419 = vmatprep.subr.mxu0 0.0
    %420 = vmatpush1.msra.mxu0 0.0
    %421 = vmatprep.subr.mxu0 0.0
    %422 = vmatpush1.msra.mxu0 0.0
    %423 = vmatprep.subr.mxu0 0.0
    %424 = vmatpush1.msra.mxu0 0.0
    %425 = vmatprep.subr.mxu0 0.0
    %426 = vmatpush1.msra.mxu0 0.0
    %427 = vmatprep.subr.mxu0 0.0
    %428 = vmatpush1.msra.mxu0 0.0
    %429 = vmatprep.subr.mxu0 0.0
    %430 = vmatpush1.msra.mxu0 0.0
    %431 = vmatprep.subr.mxu0 0.0
    %432 = vmatpush1.msra.mxu0 0.0
    %433 = vmatprep.subr.mxu0 0.0
    %434 = vmatpush1.msra.mxu0 0.0
    %435 = vmatprep.subr.mxu0 0.0
    %436 = vmatpush1.msra.mxu0 0.0
    %437 = vmatprep.subr.mxu0 0.0
    %438 = vmatpush1.msra.mxu0 0.0
    %439 = vmatprep.subr.mxu0 0.0
    %440 = vmatpush1.msra.mxu0 0.0
    %441 = vmatprep.subr.mxu0 0.0
    %442 = vmatpush1.msra.mxu0 0.0
    %443 = vmatprep.subr.mxu0 0.0
    %444 = vmatpush1.msra.mxu0 0.0
    %445 = vmatprep.subr.mxu0 0.0
    %446 = vmatpush1.msra.mxu0 0.0
    %447 = vmatprep.subr.mxu0 0.0
    %448 = vmatpush1.msra.mxu0 0.0
    %449 = vmatprep.subr.mxu0 0.0
    %450 = vmatpush1.msra.mxu0 0.0
    %451 = vmatprep.subr.mxu0 0.0
    %452 = vmatpush1.msra.mxu0 0.0
    %453 = vmatprep.subr.mxu0 0.0
    %454 = vmatpush1.msra.mxu0 0.0
    %455 = vmatprep.subr.mxu0 0.0
    %456 = vmatpush1.msra.mxu0 0.0
    %457 = vmatprep.subr.mxu0 0.0
    %458 = vmatpush1.msra.mxu0 0.0
    %459 = vmatprep.subr.mxu0 0.0
    %460 = vmatpush1.msra.mxu0 0.0
    %461 = vmatprep.subr.mxu0 0.0
    %462 = vmatpush1.msra.mxu0 0.0
    %463 = vmatprep.subr.mxu0 0.0
    %464 = vmatpush1.msra.mxu0 0.0
    %465 = vmatprep.subr.mxu0 0.0
    %466 = vmatpush1.msra.mxu0 0.0
    %467 = vmatprep.subr.mxu0 0.0
    %468 = vmatpush1.msra.mxu0 0.0
    %469 = vmatprep.subr.mxu0 0.0
    %470 = vmatpush1.msra.mxu0 0.0
    %471 = vmatprep.subr.mxu0 0.0
    %472 = vmatpush1.msra.mxu0 0.0
    %473 = vmatprep.subr.mxu0 0.0
    %474 = vmatpush1.msra.mxu0 0.0
    %475 = vmatprep.subr.mxu0 0.0
    %476 = vmatpush1.msra.mxu0 0.0
    %477 = vmatprep.subr.mxu0 0.0
    %478 = vmatpush1.msra.mxu0 0.0
    %479 = vmatprep.mubr.f32.mxu0 0.0
    %480 = vmatmul.mubr.f32.gmra.mrb[0].mxu0 %v413
    %v481 = vpop.f32.mrb[0].mxu0
    %v482 = vadd.f32 0.0, %v481
    %v483 = vpop.f32.mrb[0].mxu0
    %484 = vdwg.mxu0
    %485 = vrot.lane.b32.xlu0 %v136, 120
    %v486 = vpop.permute.xlu0 %485
    %487 = vrot.lane.b32.xlu0 %v136, 88
    %v488 = vpop.permute.xlu0 %487
    %v489 = vsel %vm151, %v486, 0
    %v491 = vsel %vm151, %v488, 0
    %493 = vmatprep.subr.mxu0 0.0
    %494 = vmatpush1.xpose.msra.mxu0 %v491
    %495 = vmatprep.subr.mxu0 0.0
    %496 = vmatpush1.xpose.msra.mxu0 0.0
    %497 = vmatprep.subr.mxu0 0.0
    %498 = vmatpush1.xpose.msra.mxu0 0.0
    %499 = vmatprep.subr.mxu0 0.0
    %500 = vmatpush1.xpose.msra.mxu0 0.0
    %501 = vmatprep.subr.mxu0 0.0
    %502 = vmatpush1.xpose.msra.mxu0 0.0
    %503 = vmatprep.subr.mxu0 0.0
    %504 = vmatpush1.xpose.msra.mxu0 0.0
    %505 = vmatprep.subr.mxu0 0.0
    %506 = vmatpush1.xpose.msra.mxu0 0.0
    %507 = vmatprep.subr.mxu0 0.0
    %508 = vmatpush1.xpose.msra.mxu0 0.0
    %509 = vmatprep.subr.mxu0 0.0
    %510 = vmatpush1.xpose.msra.mxu0 0.0
    %511 = vmatprep.subr.mxu0 0.0
    %512 = vmatpush1.xpose.msra.mxu0 0.0
    %513 = vmatprep.subr.mxu0 0.0
    %514 = vmatpush1.xpose.msra.mxu0 0.0
    %515 = vmatprep.subr.mxu0 0.0
    %516 = vmatpush1.xpose.msra.mxu0 0.0
    %517 = vmatprep.subr.mxu0 0.0
    %518 = vmatpush1.xpose.msra.mxu0 0.0
    %519 = vmatprep.subr.mxu0 0.0
    %520 = vmatpush1.xpose.msra.mxu0 0.0
    %521 = vmatprep.subr.mxu0 0.0
    %522 = vmatpush1.xpose.msra.mxu0 0.0
    %523 = vmatprep.subr.mxu0 0.0
    %524 = vmatpush1.xpose.msra.mxu0 0.0
    %525 = vmatprep.subr.mxu0 0.0
    %526 = vmatpush1.xpose.msra.mxu0 0.0
    %527 = vmatprep.subr.mxu0 0.0
    %528 = vmatpush1.xpose.msra.mxu0 0.0
    %529 = vmatprep.subr.mxu0 0.0
    %530 = vmatpush1.xpose.msra.mxu0 0.0
    %531 = vmatprep.subr.mxu0 0.0
    %532 = vmatpush1.xpose.msra.mxu0 0.0
    %533 = vmatprep.subr.mxu0 0.0
    %534 = vmatpush1.xpose.msra.mxu0 0.0
    %535 = vmatprep.subr.mxu0 0.0
    %536 = vmatpush1.xpose.msra.mxu0 0.0
    %537 = vmatprep.subr.mxu0 0.0
    %538 = vmatpush1.xpose.msra.mxu0 0.0
    %539 = vmatprep.subr.mxu0 0.0
    %540 = vmatpush1.xpose.msra.mxu0 0.0
    %541 = vmatprep.subr.mxu0 0.0
    %542 = vmatpush1.xpose.msra.mxu0 0.0
    %543 = vmatprep.subr.mxu0 0.0
    %544 = vmatpush1.xpose.msra.mxu0 0.0
    %545 = vmatprep.subr.mxu0 0.0
    %546 = vmatpush1.xpose.msra.mxu0 0.0
    %547 = vmatprep.subr.mxu0 0.0
    %548 = vmatpush1.xpose.msra.mxu0 0.0
    %549 = vmatprep.subr.mxu0 0.0
    %550 = vmatpush1.xpose.msra.mxu0 0.0
    %551 = vmatprep.subr.mxu0 0.0
    %552 = vmatpush1.xpose.msra.mxu0 0.0
    %553 = vmatprep.subr.mxu0 0.0
    %554 = vmatpush1.xpose.msra.mxu0 0.0
    %555 = vmatprep.subr.mxu0 0.0
    %556 = vmatpush1.xpose.msra.mxu0 0.0
    %557 = vmatprep.mubr.f32.mxu0 0.0
    %558 = vmatmul.mubr.f32.gmra.mrb[0].mxu0 %v489
    %v559 = vpop.f32.mrb[0].mxu0
    %v560 = vadd.f32 0.0, %v559
    %v561 = vpop.f32.mrb[0].mxu0
    %562 = vdwg.mxu0
    %563 = vrot.lane.b32.xlu0 %v141, 120
    %v564 = vpop.permute.xlu0 %563
    %565 = vrot.lane.b32.xlu0 %v141, 88
    %v566 = vpop.permute.xlu0 %565
    %v567 = vsel %vm151, %v564, 0
    %v569 = vsel %vm151, %v566, 0
    %571 = vmatprep.subr.mxu0 0.0
    %572 = vmatpush1.xpose.msra.mxu0 %v569
    %573 = vmatprep.subr.mxu0 0.0
    %574 = vmatpush1.xpose.msra.mxu0 0.0
    %575 = vmatprep.subr.mxu0 0.0
    %576 = vmatpush1.xpose.msra.mxu0 0.0
    %577 = vmatprep.subr.mxu0 0.0
    %578 = vmatpush1.xpose.msra.mxu0 0.0
    %579 = vmatprep.subr.mxu0 0.0
    %580 = vmatpush1.xpose.msra.mxu0 0.0
    %581 = vmatprep.subr.mxu0 0.0
    %582 = vmatpush1.xpose.msra.mxu0 0.0
    %583 = vmatprep.subr.mxu0 0.0
    %584 = vmatpush1.xpose.msra.mxu0 0.0
    %585 = vmatprep.subr.mxu0 0.0
    %586 = vmatpush1.xpose.msra.mxu0 0.0
    %587 = vmatprep.subr.mxu0 0.0
    %588 = vmatpush1.xpose.msra.mxu0 0.0
    %589 = vmatprep.subr.mxu0 0.0
    %590 = vmatpush1.xpose.msra.mxu0 0.0
    %591 = vmatprep.subr.mxu0 0.0
    %592 = vmatpush1.xpose.msra.mxu0 0.0
    %593 = vmatprep.subr.mxu0 0.0
    %594 = vmatpush1.xpose.msra.mxu0 0.0
    %595 = vmatprep.subr.mxu0 0.0
    %596 = vmatpush1.xpose.msra.mxu0 0.0
    %597 = vmatprep.subr.mxu0 0.0
    %598 = vmatpush1.xpose.msra.mxu0 0.0
    %599 = vmatprep.subr.mxu0 0.0
    %600 = vmatpush1.xpose.msra.mxu0 0.0
    %601 = vmatprep.subr.mxu0 0.0
    %602 = vmatpush1.xpose.msra.mxu0 0.0
    %603 = vmatprep.subr.mxu0 0.0
    %604 = vmatpush1.xpose.msra.mxu0 0.0
    %605 = vmatprep.subr.mxu0 0.0
    %606 = vmatpush1.xpose.msra.mxu0 0.0
    %607 = vmatprep.subr.mxu0 0.0
    %608 = vmatpush1.xpose.msra.mxu0 0.0
    %609 = vmatprep.subr.mxu0 0.0
    %610 = vmatpush1.xpose.msra.mxu0 0.0
    %611 = vmatprep.subr.mxu0 0.0
    %612 = vmatpush1.xpose.msra.mxu0 0.0
    %613 = vmatprep.subr.mxu0 0.0
    %614 = vmatpush1.xpose.msra.mxu0 0.0
    %615 = vmatprep.subr.mxu0 0.0
    %616 = vmatpush1.xpose.msra.mxu0 0.0
    %617 = vmatprep.subr.mxu0 0.0
    %618 = vmatpush1.xpose.msra.mxu0 0.0
    %619 = vmatprep.subr.mxu0 0.0
    %620 = vmatpush1.xpose.msra.mxu0 0.0
    %621 = vmatprep.subr.mxu0 0.0
    %622 = vmatpush1.xpose.msra.mxu0 0.0
    %623 = vmatprep.subr.mxu0 0.0
    %624 = vmatpush1.xpose.msra.mxu0 0.0
    %625 = vmatprep.subr.mxu0 0.0
    %626 = vmatpush1.xpose.msra.mxu0 0.0
    %627 = vmatprep.subr.mxu0 0.0
    %628 = vmatpush1.xpose.msra.mxu0 0.0
    %629 = vmatprep.subr.mxu0 0.0
    %630 = vmatpush1.xpose.msra.mxu0 0.0
    %631 = vmatprep.subr.mxu0 0.0
    %632 = vmatpush1.xpose.msra.mxu0 0.0
    %633 = vmatprep.subr.mxu0 0.0
    %634 = vmatpush1.xpose.msra.mxu0 0.0
    %635 = vmatprep.mubr.f32.mxu0 0.0
    %636 = vmatmul.mubr.f32.gmra.mrb[0].mxu0 %v567
    %v637 = vpop.f32.mrb[0].mxu0
    %v638 = vadd.f32 0.0, %v637
    %v639 = vpop.f32.mrb[0].mxu0
    %640 = vdwg.mxu0
    %v641 = vmul.f32 %v560, 0.35355338
    %v642 = vmul.f32 %v638, 0.35355338
    %v643 = vsel %vm151, %v641, -inf
    %644 = vmax.xlane.f32.xlu0 %v643
    %v645 = vpop.xlane.xlu0 %644
    %v646 = vsel %vm151, %v642, -inf
    %647 = vmax.xlane.f32.xlu0 %v646
    %v648 = vpop.xlane.xlu0 %647
    %v649 = vsub.f32 %v641, %v645
    %v650 = vsub.f32 %v642, %v648
    %v651 = vmul.f32 %v649, 1.442695
    %v652 = vpow.pop %v651
    %v653 = vmul.f32 %v650, 1.442695
    %v654 = vpow.pop %v653
    %v655 = vsel %vm151, %v652, 0.0
    %656 = vadd.xlane.f32.xlu0 %v655
    %v657 = vpop.xlane.xlu0 %656
    %v658 = vsel %vm151, %v654, 0.0
    %659 = vadd.xlane.f32.xlu0 %v658
    %v660 = vpop.xlane.xlu0 %659
    %v661 = vrcp.pop %v657
    %v662 = vrcp.pop %v660
    %v663 = vmul.f32 %v657, %v661
    %v664 = vmul.f32 %v660, %v662
    %v665 = vsub.f32 2.0, %v663
    %v666 = vsub.f32 2.0, %v664
    %v667 = vmul.f32 %v661, %v665
    %v668 = vmul.f32 %v662, %v666
    %v669 = vmul.f32 %v652, %v667
    %v670 = vmul.f32 %v654, %v668
    %671 = vrot.lane.b32.xlu0 %v136, 56
    %v672 = vpop.permute.xlu0 %671
    %v675 = vsel %vm151, %v669, 0
    %677 = vmatprep.subr.mxu0 0.0
    %678 = vmatpush1.msra.mxu0 %v672
    %679 = vmatprep.subr.mxu0 0.0
    %680 = vmatpush1.msra.mxu0 0.0
    %681 = vmatprep.subr.mxu0 0.0
    %682 = vmatpush1.msra.mxu0 0.0
    %683 = vmatprep.subr.mxu0 0.0
    %684 = vmatpush1.msra.mxu0 0.0
    %685 = vmatprep.subr.mxu0 0.0
    %686 = vmatpush1.msra.mxu0 0.0
    %687 = vmatprep.subr.mxu0 0.0
    %688 = vmatpush1.msra.mxu0 0.0
    %689 = vmatprep.subr.mxu0 0.0
    %690 = vmatpush1.msra.mxu0 0.0
    %691 = vmatprep.subr.mxu0 0.0
    %692 = vmatpush1.msra.mxu0 0.0
    %693 = vmatprep.subr.mxu0 0.0
    %694 = vmatpush1.msra.mxu0 0.0
    %695 = vmatprep.subr.mxu0 0.0
    %696 = vmatpush1.msra.mxu0 0.0
    %697 = vmatprep.subr.mxu0 0.0
    %698 = vmatpush1.msra.mxu0 0.0
    %699 = vmatprep.subr.mxu0 0.0
    %700 = vmatpush1.msra.mxu0 0.0
    %701 = vmatprep.subr.mxu0 0.0
    %702 = vmatpush1.msra.mxu0 0.0
    %703 = vmatprep.subr.mxu0 0.0
    %704 = vmatpush1.msra.mxu0 0.0
    %705 = vmatprep.subr.mxu0 0.0
    %706 = vmatpush1.msra.mxu0 0.0
    %707 = vmatprep.subr.mxu0 0.0
    %708 = vmatpush1.msra.mxu0 0.0
    %709 = vmatprep.subr.mxu0 0.0
    %710 = vmatpush1.msra.mxu0 0.0
    %711 = vmatprep.subr.mxu0 0.0
    %712 = vmatpush1.msra.mxu0 0.0
    %713 = vmatprep.subr.mxu0 0.0
    %714 = vmatpush1.msra.mxu0 0.0
    %715 = vmatprep.subr.mxu0 0.0
    %716 = vmatpush1.msra.mxu0 0.0
    %717 = vmatprep.subr.mxu0 0.0
    %718 = vmatpush1.msra.mxu0 0.0
    %719 = vmatprep.subr.mxu0 0.0
    %720 = vmatpush1.msra.mxu0 0.0
    %721 = vmatprep.subr.mxu0 0.0
    %722 = vmatpush1.msra.mxu0 0.0
    %723 = vmatprep.subr.mxu0 0.0
    %724 = vmatpush1.msra.mxu0 0.0
    %725 = vmatprep.subr.mxu0 0.0
    %726 = vmatpush1.msra.mxu0 0.0
    %727 = vmatprep.subr.mxu0 0.0
    %728 = vmatpush1.msra.mxu0 0.0
    %729 = vmatprep.subr.mxu0 0.0
    %730 = vmatpush1.msra.mxu0 0.0
    %731 = vmatprep.subr.mxu0 0.0
    %732 = vmatpush1.msra.mxu0 0.0
    %733 = vmatprep.subr.mxu0 0.0
    %734 = vmatpush1.msra.mxu0 0.0
    %735 = vmatprep.subr.mxu0 0.0
    %736 = vmatpush1.msra.mxu0 0.0
    %737 = vmatprep.subr.mxu0 0.0
    %738 = vmatpush1.msra.mxu0 0.0
    %739 = vmatprep.subr.mxu0 0.0
    %740 = vmatpush1.msra.mxu0 0.0
    %741 = vmatprep.mubr.f32.mxu0 0.0
    %742 = vmatmul.mubr.f32.gmra.mrb[0].mxu0 %v675
    %v743 = vpop.f32.mrb[0].mxu0
    %v744 = vadd.f32 0.0, %v743
    %v745 = vpop.f32.mrb[0].mxu0
    %746 = vdwg.mxu0
    %747 = vrot.lane.b32.xlu0 %v141, 56
    %v748 = vpop.permute.xlu0 %747
    %v751 = vsel %vm151, %v670, 0
    %753 = vmatprep.subr.mxu0 0.0
    %754 = vmatpush1.msra.mxu0 %v748
    %755 = vmatprep.subr.mxu0 0.0
    %756 = vmatpush1.msra.mxu0 0.0
    %757 = vmatprep.subr.mxu0 0.0
    %758 = vmatpush1.msra.mxu0 0.0
    %759 = vmatprep.subr.mxu0 0.0
    %760 = vmatpush1.msra.mxu0 0.0
    %761 = vmatprep.subr.mxu0 0.0
    %762 = vmatpush1.msra.mxu0 0.0
    %763 = vmatprep.subr.mxu0 0.0
    %764 = vmatpush1.msra.mxu0 0.0
    %765 = vmatprep.subr.mxu0 0.0
    %766 = vmatpush1.msra.mxu0 0.0
    %767 = vmatprep.subr.mxu0 0.0
    %768 = vmatpush1.msra.mxu0 0.0
    %769 = vmatprep.subr.mxu0 0.0
    %770 = vmatpush1.msra.mxu0 0.0
    %771 = vmatprep.subr.mxu0 0.0
    %772 = vmatpush1.msra.mxu0 0.0
    %773 = vmatprep.subr.mxu0 0.0
    %774 = vmatpush1.msra.mxu0 0.0
    %775 = vmatprep.subr.mxu0 0.0
    %776 = vmatpush1.msra.mxu0 0.0
    %777 = vmatprep.subr.mxu0 0.0
    %778 = vmatpush1.msra.mxu0 0.0
    %779 = vmatprep.subr.mxu0 0.0
    %780 = vmatpush1.msra.mxu0 0.0
    %781 = vmatprep.subr.mxu0 0.0
    %782 = vmatpush1.msra.mxu0 0.0
    %783 = vmatprep.subr.mxu0 0.0
    %784 = vmatpush1.msra.mxu0 0.0
    %785 = vmatprep.subr.mxu0 0.0
    %786 = vmatpush1.msra.mxu0 0.0
    %787 = vmatprep.subr.mxu0 0.0
    %788 = vmatpush1.msra.mxu0 0.0
    %789 = vmatprep.subr.mxu0 0.0
    %790 = vmatpush1.msra.mxu0 0.0
    %791 = vmatprep.subr.mxu0 0.0
    %792 = vmatpush1.msra.mxu0 0.0
    %793 = vmatprep.subr.mxu0 0.0
    %794 = vmatpush1.msra.mxu0 0.0
    %795 = vmatprep.subr.mxu0 0.0
    %796 = vmatpush1.msra.mxu0 0.0
    %797 = vmatprep.subr.mxu0 0.0
    %798 = vmatpush1.msra.mxu0 0.0
    %799 = vmatprep.subr.mxu0 0.0
    %800 = vmatpush1.msra.mxu0 0.0
    %801 = vmatprep.subr.mxu0 0.0
    %802 = vmatpush1.msra.mxu0 0.0
    %803 = vmatprep.subr.mxu0 0.0
    %804 = vmatpush1.msra.mxu0 0.0
    %805 = vmatprep.subr.mxu0 0.0
    %806 = vmatpush1.msra.mxu0 0.0
    %807 = vmatprep.subr.mxu0 0.0
    %808 = vmatpush1.msra.mxu0 0.0
    %809 = vmatprep.subr.mxu0 0.0
    %810 = vmatpush1.msra.mxu0 0.0
    %811 = vmatprep.subr.mxu0 0.0
    %812 = vmatpush1.msra.mxu0 0.0
    %813 = vmatprep.subr.mxu0 0.0
    %814 = vmatpush1.msra.mxu0 0.0
    %815 = vmatprep.subr.mxu0 0.0
    %816 = vmatpush1.msra.mxu0 0.0
    %817 = vmatprep.mubr.f32.mxu0 0.0
    %818 = vmatmul.mubr.f32.gmra.mrb[0].mxu0 %v751
    %v819 = vpop.f32.mrb[0].mxu0
    %v820 = vadd.f32 0.0, %v819
    %v821 = vpop.f32.mrb[0].mxu0
    %822 = vdwg.mxu0
    %823 = vrot.lane.b32.xlu0 %v136, 112
    %v824 = vpop.permute.xlu0 %823
    %825 = vrot.lane.b32.xlu0 %v136, 80
    %v826 = vpop.permute.xlu0 %825
    %v827 = vsel %vm151, %v824, 0
    %v829 = vsel %vm151, %v826, 0
    %831 = vmatprep.subr.mxu0 0.0
    %832 = vmatpush1.xpose.msra.mxu0 %v829
    %833 = vmatprep.subr.mxu0 0.0
    %834 = vmatpush1.xpose.msra.mxu0 0.0
    %835 = vmatprep.subr.mxu0 0.0
    %836 = vmatpush1.xpose.msra.mxu0 0.0
    %837 = vmatprep.subr.mxu0 0.0
    %838 = vmatpush1.xpose.msra.mxu0 0.0
    %839 = vmatprep.subr.mxu0 0.0
    %840 = vmatpush1.xpose.msra.mxu0 0.0
    %841 = vmatprep.subr.mxu0 0.0
    %842 = vmatpush1.xpose.msra.mxu0 0.0
    %843 = vmatprep.subr.mxu0 0.0
    %844 = vmatpush1.xpose.msra.mxu0 0.0
    %845 = vmatprep.subr.mxu0 0.0
    %846 = vmatpush1.xpose.msra.mxu0 0.0
    %847 = vmatprep.subr.mxu0 0.0
    %848 = vmatpush1.xpose.msra.mxu0 0.0
    %849 = vmatprep.subr.mxu0 0.0
    %850 = vmatpush1.xpose.msra.mxu0 0.0
    %851 = vmatprep.subr.mxu0 0.0
    %852 = vmatpush1.xpose.msra.mxu0 0.0
    %853 = vmatprep.subr.mxu0 0.0
    %854 = vmatpush1.xpose.msra.mxu0 0.0
    %855 = vmatprep.subr.mxu0 0.0
    %856 = vmatpush1.xpose.msra.mxu0 0.0
    %857 = vmatprep.subr.mxu0 0.0
    %858 = vmatpush1.xpose.msra.mxu0 0.0
    %859 = vmatprep.subr.mxu0 0.0
    %860 = vmatpush1.xpose.msra.mxu0 0.0
    %861 = vmatprep.subr.mxu0 0.0
    %862 = vmatpush1.xpose.msra.mxu0 0.0
    %863 = vmatprep.subr.mxu0 0.0
    %864 = vmatpush1.xpose.msra.mxu0 0.0
    %865 = vmatprep.subr.mxu0 0.0
    %866 = vmatpush1.xpose.msra.mxu0 0.0
    %867 = vmatprep.subr.mxu0 0.0
    %868 = vmatpush1.xpose.msra.mxu0 0.0
    %869 = vmatprep.subr.mxu0 0.0
    %870 = vmatpush1.xpose.msra.mxu0 0.0
    %871 = vmatprep.subr.mxu0 0.0
    %872 = vmatpush1.xpose.msra.mxu0 0.0
    %873 = vmatprep.subr.mxu0 0.0
    %874 = vmatpush1.xpose.msra.mxu0 0.0
    %875 = vmatprep.subr.mxu0 0.0
    %876 = vmatpush1.xpose.msra.mxu0 0.0
    %877 = vmatprep.subr.mxu0 0.0
    %878 = vmatpush1.xpose.msra.mxu0 0.0
    %879 = vmatprep.subr.mxu0 0.0
    %880 = vmatpush1.xpose.msra.mxu0 0.0
    %881 = vmatprep.subr.mxu0 0.0
    %882 = vmatpush1.xpose.msra.mxu0 0.0
    %883 = vmatprep.subr.mxu0 0.0
    %884 = vmatpush1.xpose.msra.mxu0 0.0
    %885 = vmatprep.subr.mxu0 0.0
    %886 = vmatpush1.xpose.msra.mxu0 0.0
    %887 = vmatprep.subr.mxu0 0.0
    %888 = vmatpush1.xpose.msra.mxu0 0.0
    %889 = vmatprep.subr.mxu0 0.0
    %890 = vmatpush1.xpose.msra.mxu0 0.0
    %891 = vmatprep.subr.mxu0 0.0
    %892 = vmatpush1.xpose.msra.mxu0 0.0
    %893 = vmatprep.subr.mxu0 0.0
    %894 = vmatpush1.xpose.msra.mxu0 0.0
    %895 = vmatprep.mubr.f32.mxu0 0.0
    %896 = vmatmul.mubr.f32.gmra.mrb[0].mxu0 %v827
    %v897 = vpop.f32.mrb[0].mxu0
    %v898 = vadd.f32 0.0, %v897
    %v899 = vpop.f32.mrb[0].mxu0
    %900 = vdwg.mxu0
    %901 = vrot.lane.b32.xlu0 %v141, 112
    %v902 = vpop.permute.xlu0 %901
    %903 = vrot.lane.b32.xlu0 %v141, 80
    %v904 = vpop.permute.xlu0 %903
    %v905 = vsel %vm151, %v902, 0
    %v907 = vsel %vm151, %v904, 0
    %909 = vmatprep.subr.mxu0 0.0
    %910 = vmatpush1.xpose.msra.mxu0 %v907
    %911 = vmatprep.subr.mxu0 0.0
    %912 = vmatpush1.xpose.msra.mxu0 0.0
    %913 = vmatprep.subr.mxu0 0.0
    %914 = vmatpush1.xpose.msra.mxu0 0.0
    %915 = vmatprep.subr.mxu0 0.0
    %916 = vmatpush1.xpose.msra.mxu0 0.0
    %917 = vmatprep.subr.mxu0 0.0
    %918 = vmatpush1.xpose.msra.mxu0 0.0
    %919 = vmatprep.subr.mxu0 0.0
    %920 = vmatpush1.xpose.msra.mxu0 0.0
    %921 = vmatprep.subr.mxu0 0.0
    %922 = vmatpush1.xpose.msra.mxu0 0.0
    %923 = vmatprep.subr.mxu0 0.0
    %924 = vmatpush1.xpose.msra.mxu0 0.0
    %925 = vmatprep.subr.mxu0 0.0
    %926 = vmatpush1.xpose.msra.mxu0 0.0
    %927 = vmatprep.subr.mxu0 0.0
    %928 = vmatpush1.xpose.msra.mxu0 0.0
    %929 = vmatprep.subr.mxu0 0.0
    %930 = vmatpush1.xpose.msra.mxu0 0.0
    %931 = vmatprep.subr.mxu0 0.0
    %932 = vmatpush1.xpose.msra.mxu0 0.0
    %933 = vmatprep.subr.mxu0 0.0
    %934 = vmatpush1.xpose.msra.mxu0 0.0
    %935 = vmatprep.subr.mxu0 0.0
    %936 = vmatpush1.xpose.msra.mxu0 0.0
    %937 = vmatprep.subr.mxu0 0.0
    %938 = vmatpush1.xpose.msra.mxu0 0.0
    %939 = vmatprep.subr.mxu0 0.0
    %940 = vmatpush1.xpose.msra.mxu0 0.0
    %941 = vmatprep.subr.mxu0 0.0
    %942 = vmatpush1.xpose.msra.mxu0 0.0
    %943 = vmatprep.subr.mxu0 0.0
    %944 = vmatpush1.xpose.msra.mxu0 0.0
    %945 = vmatprep.subr.mxu0 0.0
    %946 = vmatpush1.xpose.msra.mxu0 0.0
    %947 = vmatprep.subr.mxu0 0.0
    %948 = vmatpush1.xpose.msra.mxu0 0.0
    %949 = vmatprep.subr.mxu0 0.0
    %950 = vmatpush1.xpose.msra.mxu0 0.0
    %951 = vmatprep.subr.mxu0 0.0
    %952 = vmatpush1.xpose.msra.mxu0 0.0
    %953 = vmatprep.subr.mxu0 0.0
    %954 = vmatpush1.xpose.msra.mxu0 0.0
    %955 = vmatprep.subr.mxu0 0.0
    %956 = vmatpush1.xpose.msra.mxu0 0.0
    %957 = vmatprep.subr.mxu0 0.0
    %958 = vmatpush1.xpose.msra.mxu0 0.0
    %959 = vmatprep.subr.mxu0 0.0
    %960 = vmatpush1.xpose.msra.mxu0 0.0
    %961 = vmatprep.subr.mxu0 0.0
    %962 = vmatpush1.xpose.msra.mxu0 0.0
    %963 = vmatprep.subr.mxu0 0.0
    %964 = vmatpush1.xpose.msra.mxu0 0.0
    %965 = vmatprep.subr.mxu0 0.0
    %966 = vmatpush1.xpose.msra.mxu0 0.0
    %967 = vmatprep.subr.mxu0 0.0
    %968 = vmatpush1.xpose.msra.mxu0 0.0
    %969 = vmatprep.subr.mxu0 0.0
    %970 = vmatpush1.xpose.msra.mxu0 0.0
    %971 = vmatprep.subr.mxu0 0.0
    %972 = vmatpush1.xpose.msra.mxu0 0.0
    %973 = vmatprep.mubr.f32.mxu0 0.0
    %974 = vmatmul.mubr.f32.gmra.mrb[0].mxu0 %v905
    %v975 = vpop.f32.mrb[0].mxu0
    %v976 = vadd.f32 0.0, %v975
    %v977 = vpop.f32.mrb[0].mxu0
    %978 = vdwg.mxu0
    %v979 = vmul.f32 %v898, 0.35355338
    %v980 = vmul.f32 %v976, 0.35355338
    %v981 = vsel %vm151, %v979, -inf
    %982 = vmax.xlane.f32.xlu0 %v981
    %v983 = vpop.xlane.xlu0 %982
    %v984 = vsel %vm151, %v980, -inf
    %985 = vmax.xlane.f32.xlu0 %v984
    %v986 = vpop.xlane.xlu0 %985
    %v987 = vsub.f32 %v979, %v983
    %v988 = vsub.f32 %v980, %v986
    %v989 = vmul.f32 %v987, 1.442695
    %v990 = vpow.pop %v989
    %v991 = vmul.f32 %v988, 1.442695
    %v992 = vpow.pop %v991
    %v993 = vsel %vm151, %v990, 0.0
    %994 = vadd.xlane.f32.xlu0 %v993
    %v995 = vpop.xlane.xlu0 %994
    %v996 = vsel %vm151, %v992, 0.0
    %997 = vadd.xlane.f32.xlu0 %v996
    %v998 = vpop.xlane.xlu0 %997
    %v999 = vrcp.pop %v995
    %v1000 = vrcp.pop %v998
    %v1001 = vmul.f32 %v995, %v999
    %v1002 = vmul.f32 %v998, %v1000
    %v1003 = vsub.f32 2.0, %v1001
    %v1004 = vsub.f32 2.0, %v1002
    %v1005 = vmul.f32 %v999, %v1003
    %v1006 = vmul.f32 %v1000, %v1004
    %v1007 = vmul.f32 %v990, %v1005
    %v1008 = vmul.f32 %v992, %v1006
    %1009 = vrot.lane.b32.xlu0 %v136, 48
    %v1010 = vpop.permute.xlu0 %1009
    %v1013 = vsel %vm151, %v1007, 0
    %1015 = vmatprep.subr.mxu0 0.0
    %1016 = vmatpush1.msra.mxu0 %v1010
    %1017 = vmatprep.subr.mxu0 0.0
    %1018 = vmatpush1.msra.mxu0 0.0
    %1019 = vmatprep.subr.mxu0 0.0
    %1020 = vmatpush1.msra.mxu0 0.0
    %1021 = vmatprep.subr.mxu0 0.0
    %1022 = vmatpush1.msra.mxu0 0.0
    %1023 = vmatprep.subr.mxu0 0.0
    %1024 = vmatpush1.msra.mxu0 0.0
    %1025 = vmatprep.subr.mxu0 0.0
    %1026 = vmatpush1.msra.mxu0 0.0
    %1027 = vmatprep.subr.mxu0 0.0
    %1028 = vmatpush1.msra.mxu0 0.0
    %1029 = vmatprep.subr.mxu0 0.0
    %1030 = vmatpush1.msra.mxu0 0.0
    %1031 = vmatprep.subr.mxu0 0.0
    %1032 = vmatpush1.msra.mxu0 0.0
    %1033 = vmatprep.subr.mxu0 0.0
    %1034 = vmatpush1.msra.mxu0 0.0
    %1035 = vmatprep.subr.mxu0 0.0
    %1036 = vmatpush1.msra.mxu0 0.0
    %1037 = vmatprep.subr.mxu0 0.0
    %1038 = vmatpush1.msra.mxu0 0.0
    %1039 = vmatprep.subr.mxu0 0.0
    %1040 = vmatpush1.msra.mxu0 0.0
    %1041 = vmatprep.subr.mxu0 0.0
    %1042 = vmatpush1.msra.mxu0 0.0
    %1043 = vmatprep.subr.mxu0 0.0
    %1044 = vmatpush1.msra.mxu0 0.0
    %1045 = vmatprep.subr.mxu0 0.0
    %1046 = vmatpush1.msra.mxu0 0.0
    %1047 = vmatprep.subr.mxu0 0.0
    %1048 = vmatpush1.msra.mxu0 0.0
    %1049 = vmatprep.subr.mxu0 0.0
    %1050 = vmatpush1.msra.mxu0 0.0
    %1051 = vmatprep.subr.mxu0 0.0
    %1052 = vmatpush1.msra.mxu0 0.0
    %1053 = vmatprep.subr.mxu0 0.0
    %1054 = vmatpush1.msra.mxu0 0.0
    %1055 = vmatprep.subr.mxu0 0.0
    %1056 = vmatpush1.msra.mxu0 0.0
    %1057 = vmatprep.subr.mxu0 0.0
    %1058 = vmatpush1.msra.mxu0 0.0
    %1059 = vmatprep.subr.mxu0 0.0
    %1060 = vmatpush1.msra.mxu0 0.0
    %1061 = vmatprep.subr.mxu0 0.0
    %1062 = vmatpush1.msra.mxu0 0.0
    %1063 = vmatprep.subr.mxu0 0.0
    %1064 = vmatpush1.msra.mxu0 0.0
    %1065 = vmatprep.subr.mxu0 0.0
    %1066 = vmatpush1.msra.mxu0 0.0
    %1067 = vmatprep.subr.mxu0 0.0
    %1068 = vmatpush1.msra.mxu0 0.0
    %1069 = vmatprep.subr.mxu0 0.0
    %1070 = vmatpush1.msra.mxu0 0.0
    %1071 = vmatprep.subr.mxu0 0.0
    %1072 = vmatpush1.msra.mxu0 0.0
    %1073 = vmatprep.subr.mxu0 0.0
    %1074 = vmatpush1.msra.mxu0 0.0
    %1075 = vmatprep.subr.mxu0 0.0
    %1076 = vmatpush1.msra.mxu0 0.0
    %1077 = vmatprep.subr.mxu0 0.0
    %1078 = vmatpush1.msra.mxu0 0.0
    %1079 = vmatprep.mubr.f32.mxu0 0.0
    %1080 = vmatmul.mubr.f32.gmra.mrb[0].mxu0 %v1013
    %v1081 = vpop.f32.mrb[0].mxu0
    %v1082 = vadd.f32 0.0, %v1081
    %v1083 = vpop.f32.mrb[0].mxu0
    %1084 = vdwg.mxu0
    %1085 = vrot.lane.b32.xlu0 %v141, 48
    %v1086 = vpop.permute.xlu0 %1085
    %v1089 = vsel %vm151, %v1008, 0
    %1091 = vmatprep.subr.mxu0 0.0
    %1092 = vmatpush1.msra.mxu0 %v1086
    %1093 = vmatprep.subr.mxu0 0.0
    %1094 = vmatpush1.msra.mxu0 0.0
    %1095 = vmatprep.subr.mxu0 0.0
    %1096 = vmatpush1.msra.mxu0 0.0
    %1097 = vmatprep.subr.mxu0 0.0
    %1098 = vmatpush1.msra.mxu0 0.0
    %1099 = vmatprep.subr.mxu0 0.0
    %1100 = vmatpush1.msra.mxu0 0.0
    %1101 = vmatprep.subr.mxu0 0.0
    %1102 = vmatpush1.msra.mxu0 0.0
    %1103 = vmatprep.subr.mxu0 0.0
    %1104 = vmatpush1.msra.mxu0 0.0
    %1105 = vmatprep.subr.mxu0 0.0
    %1106 = vmatpush1.msra.mxu0 0.0
    %1107 = vmatprep.subr.mxu0 0.0
    %1108 = vmatpush1.msra.mxu0 0.0
    %1109 = vmatprep.subr.mxu0 0.0
    %1110 = vmatpush1.msra.mxu0 0.0
    %1111 = vmatprep.subr.mxu0 0.0
    %1112 = vmatpush1.msra.mxu0 0.0
    %1113 = vmatprep.subr.mxu0 0.0
    %1114 = vmatpush1.msra.mxu0 0.0
    %1115 = vmatprep.subr.mxu0 0.0
    %1116 = vmatpush1.msra.mxu0 0.0
    %1117 = vmatprep.subr.mxu0 0.0
    %1118 = vmatpush1.msra.mxu0 0.0
    %1119 = vmatprep.subr.mxu0 0.0
    %1120 = vmatpush1.msra.mxu0 0.0
    %1121 = vmatprep.subr.mxu0 0.0
    %1122 = vmatpush1.msra.mxu0 0.0
    %1123 = vmatprep.subr.mxu0 0.0
    %1124 = vmatpush1.msra.mxu0 0.0
    %1125 = vmatprep.subr.mxu0 0.0
    %1126 = vmatpush1.msra.mxu0 0.0
    %1127 = vmatprep.subr.mxu0 0.0
    %1128 = vmatpush1.msra.mxu0 0.0
    %1129 = vmatprep.subr.mxu0 0.0
    %1130 = vmatpush1.msra.mxu0 0.0
    %1131 = vmatprep.subr.mxu0 0.0
    %1132 = vmatpush1.msra.mxu0 0.0
    %1133 = vmatprep.subr.mxu0 0.0
    %1134 = vmatpush1.msra.mxu0 0.0
    %1135 = vmatprep.subr.mxu0 0.0
    %1136 = vmatpush1.msra.mxu0 0.0
    %1137 = vmatprep.subr.mxu0 0.0
    %1138 = vmatpush1.msra.mxu0 0.0
    %1139 = vmatprep.subr.mxu0 0.0
    %1140 = vmatpush1.msra.mxu0 0.0
    %1141 = vmatprep.subr.mxu0 0.0
    %1142 = vmatpush1.msra.mxu0 0.0
    %1143 = vmatprep.subr.mxu0 0.0
    %1144 = vmatpush1.msra.mxu0 0.0
    %1145 = vmatprep.subr.mxu0 0.0
    %1146 = vmatpush1.msra.mxu0 0.0
    %1147 = vmatprep.subr.mxu0 0.0
    %1148 = vmatpush1.msra.mxu0 0.0
    %1149 = vmatprep.subr.mxu0 0.0
    %1150 = vmatpush1.msra.mxu0 0.0
    %1151 = vmatprep.subr.mxu0 0.0
    %1152 = vmatpush1.msra.mxu0 0.0
    %1153 = vmatprep.subr.mxu0 0.0
    %1154 = vmatpush1.msra.mxu0 0.0
    %1155 = vmatprep.mubr.f32.mxu0 0.0
    %1156 = vmatmul.mubr.f32.gmra.mrb[0].mxu0 %v1089
    %v1157 = vpop.f32.mrb[0].mxu0
    %v1158 = vadd.f32 0.0, %v1157
    %v1159 = vpop.f32.mrb[0].mxu0
    %1160 = vdwg.mxu0
    %1161 = vrot.lane.b32.xlu0 %v136, 104
    %v1162 = vpop.permute.xlu0 %1161
    %1163 = vrot.lane.b32.xlu0 %v136, 72
    %v1164 = vpop.permute.xlu0 %1163
    %v1165 = vsel %vm151, %v1162, 0
    %v1167 = vsel %vm151, %v1164, 0
    %1169 = vmatprep.subr.mxu0 0.0
    %1170 = vmatpush1.xpose.msra.mxu0 %v1167
    %1171 = vmatprep.subr.mxu0 0.0
    %1172 = vmatpush1.xpose.msra.mxu0 0.0
    %1173 = vmatprep.subr.mxu0 0.0
    %1174 = vmatpush1.xpose.msra.mxu0 0.0
    %1175 = vmatprep.subr.mxu0 0.0
    %1176 = vmatpush1.xpose.msra.mxu0 0.0
    %1177 = vmatprep.subr.mxu0 0.0
    %1178 = vmatpush1.xpose.msra.mxu0 0.0
    %1179 = vmatprep.subr.mxu0 0.0
    %1180 = vmatpush1.xpose.msra.mxu0 0.0
    %1181 = vmatprep.subr.mxu0 0.0
    %1182 = vmatpush1.xpose.msra.mxu0 0.0
    %1183 = vmatprep.subr.mxu0 0.0
    %1184 = vmatpush1.xpose.msra.mxu0 0.0
    %1185 = vmatprep.subr.mxu0 0.0
    %1186 = vmatpush1.xpose.msra.mxu0 0.0
    %1187 = vmatprep.subr.mxu0 0.0
    %1188 = vmatpush1.xpose.msra.mxu0 0.0
    %1189 = vmatprep.subr.mxu0 0.0
    %1190 = vmatpush1.xpose.msra.mxu0 0.0
    %1191 = vmatprep.subr.mxu0 0.0
    %1192 = vmatpush1.xpose.msra.mxu0 0.0
    %1193 = vmatprep.subr.mxu0 0.0
    %1194 = vmatpush1.xpose.msra.mxu0 0.0
    %1195 = vmatprep.subr.mxu0 0.0
    %1196 = vmatpush1.xpose.msra.mxu0 0.0
    %1197 = vmatprep.subr.mxu0 0.0
    %1198 = vmatpush1.xpose.msra.mxu0 0.0
    %1199 = vmatprep.subr.mxu0 0.0
    %1200 = vmatpush1.xpose.msra.mxu0 0.0
    %1201 = vmatprep.subr.mxu0 0.0
    %1202 = vmatpush1.xpose.msra.mxu0 0.0
    %1203 = vmatprep.subr.mxu0 0.0
    %1204 = vmatpush1.xpose.msra.mxu0 0.0
    %1205 = vmatprep.subr.mxu0 0.0
    %1206 = vmatpush1.xpose.msra.mxu0 0.0
    %1207 = vmatprep.subr.mxu0 0.0
    %1208 = vmatpush1.xpose.msra.mxu0 0.0
    %1209 = vmatprep.subr.mxu0 0.0
    %1210 = vmatpush1.xpose.msra.mxu0 0.0
    %1211 = vmatprep.subr.mxu0 0.0
    %1212 = vmatpush1.xpose.msra.mxu0 0.0
    %1213 = vmatprep.subr.mxu0 0.0
    %1214 = vmatpush1.xpose.msra.mxu0 0.0
    %1215 = vmatprep.subr.mxu0 0.0
    %1216 = vmatpush1.xpose.msra.mxu0 0.0
    %1217 = vmatprep.subr.mxu0 0.0
    %1218 = vmatpush1.xpose.msra.mxu0 0.0
    %1219 = vmatprep.subr.mxu0 0.0
    %1220 = vmatpush1.xpose.msra.mxu0 0.0
    %1221 = vmatprep.subr.mxu0 0.0
    %1222 = vmatpush1.xpose.msra.mxu0 0.0
    %1223 = vmatprep.subr.mxu0 0.0
    %1224 = vmatpush1.xpose.msra.mxu0 0.0
    %1225 = vmatprep.subr.mxu0 0.0
    %1226 = vmatpush1.xpose.msra.mxu0 0.0
    %1227 = vmatprep.subr.mxu0 0.0
    %1228 = vmatpush1.xpose.msra.mxu0 0.0
    %1229 = vmatprep.subr.mxu0 0.0
    %1230 = vmatpush1.xpose.msra.mxu0 0.0
    %1231 = vmatprep.subr.mxu0 0.0
    %1232 = vmatpush1.xpose.msra.mxu0 0.0
    %1233 = vmatprep.mubr.f32.mxu0 0.0
    %1234 = vmatmul.mubr.f32.gmra.mrb[0].mxu0 %v1165
    %v1235 = vpop.f32.mrb[0].mxu0
    %v1236 = vadd.f32 0.0, %v1235
    %v1237 = vpop.f32.mrb[0].mxu0
    %1238 = vdwg.mxu0
    %1239 = vrot.lane.b32.xlu0 %v141, 104
    %v1240 = vpop.permute.xlu0 %1239
    %1241 = vrot.lane.b32.xlu0 %v141, 72
    %v1242 = vpop.permute.xlu0 %1241
    %v1243 = vsel %vm151, %v1240, 0
    %v1245 = vsel %vm151, %v1242, 0
    %1247 = vmatprep.subr.mxu0 0.0
    %1248 = vmatpush1.xpose.msra.mxu0 %v1245
    %1249 = vmatprep.subr.mxu0 0.0
    %1250 = vmatpush1.xpose.msra.mxu0 0.0
    %1251 = vmatprep.subr.mxu0 0.0
    %1252 = vmatpush1.xpose.msra.mxu0 0.0
    %1253 = vmatprep.subr.mxu0 0.0
    %1254 = vmatpush1.xpose.msra.mxu0 0.0
    %1255 = vmatprep.subr.mxu0 0.0
    %1256 = vmatpush1.xpose.msra.mxu0 0.0
    %1257 = vmatprep.subr.mxu0 0.0
    %1258 = vmatpush1.xpose.msra.mxu0 0.0
    %1259 = vmatprep.subr.mxu0 0.0
    %1260 = vmatpush1.xpose.msra.mxu0 0.0
    %1261 = vmatprep.subr.mxu0 0.0
    %1262 = vmatpush1.xpose.msra.mxu0 0.0
    %1263 = vmatprep.subr.mxu0 0.0
    %1264 = vmatpush1.xpose.msra.mxu0 0.0
    %1265 = vmatprep.subr.mxu0 0.0
    %1266 = vmatpush1.xpose.msra.mxu0 0.0
    %1267 = vmatprep.subr.mxu0 0.0
    %1268 = vmatpush1.xpose.msra.mxu0 0.0
    %1269 = vmatprep.subr.mxu0 0.0
    %1270 = vmatpush1.xpose.msra.mxu0 0.0
    %1271 = vmatprep.subr.mxu0 0.0
    %1272 = vmatpush1.xpose.msra.mxu0 0.0
    %1273 = vmatprep.subr.mxu0 0.0
    %1274 = vmatpush1.xpose.msra.mxu0 0.0
    %1275 = vmatprep.subr.mxu0 0.0
    %1276 = vmatpush1.xpose.msra.mxu0 0.0
    %1277 = vmatprep.subr.mxu0 0.0
    %1278 = vmatpush1.xpose.msra.mxu0 0.0
    %1279 = vmatprep.subr.mxu0 0.0
    %1280 = vmatpush1.xpose.msra.mxu0 0.0
    %1281 = vmatprep.subr.mxu0 0.0
    %1282 = vmatpush1.xpose.msra.mxu0 0.0
    %1283 = vmatprep.subr.mxu0 0.0
    %1284 = vmatpush1.xpose.msra.mxu0 0.0
    %1285 = vmatprep.subr.mxu0 0.0
    %1286 = vmatpush1.xpose.msra.mxu0 0.0
    %1287 = vmatprep.subr.mxu0 0.0
    %1288 = vmatpush1.xpose.msra.mxu0 0.0
    %1289 = vmatprep.subr.mxu0 0.0
    %1290 = vmatpush1.xpose.msra.mxu0 0.0
    %1291 = vmatprep.subr.mxu0 0.0
    %1292 = vmatpush1.xpose.msra.mxu0 0.0
    %1293 = vmatprep.subr.mxu0 0.0
    %1294 = vmatpush1.xpose.msra.mxu0 0.0
    %1295 = vmatprep.subr.mxu0 0.0
    %1296 = vmatpush1.xpose.msra.mxu0 0.0
    %1297 = vmatprep.subr.mxu0 0.0
    %1298 = vmatpush1.xpose.msra.mxu0 0.0
    %1299 = vmatprep.subr.mxu0 0.0
    %1300 = vmatpush1.xpose.msra.mxu0 0.0
    %1301 = vmatprep.subr.mxu0 0.0
    %1302 = vmatpush1.xpose.msra.mxu0 0.0
    %1303 = vmatprep.subr.mxu0 0.0
    %1304 = vmatpush1.xpose.msra.mxu0 0.0
    %1305 = vmatprep.subr.mxu0 0.0
    %1306 = vmatpush1.xpose.msra.mxu0 0.0
    %1307 = vmatprep.subr.mxu0 0.0
    %1308 = vmatpush1.xpose.msra.mxu0 0.0
    %1309 = vmatprep.subr.mxu0 0.0
    %1310 = vmatpush1.xpose.msra.mxu0 0.0
    %1311 = vmatprep.mubr.f32.mxu0 0.0
    %1312 = vmatmul.mubr.f32.gmra.mrb[0].mxu0 %v1243
    %v1313 = vpop.f32.mrb[0].mxu0
    %v1314 = vadd.f32 0.0, %v1313
    %v1315 = vpop.f32.mrb[0].mxu0
    %1316 = vdwg.mxu0
    %v1317 = vmul.f32 %v1236, 0.35355338
    %v1318 = vmul.f32 %v1314, 0.35355338
    %v1319 = vsel %vm151, %v1317, -inf
    %1320 = vmax.xlane.f32.xlu0 %v1319
    %v1321 = vpop.xlane.xlu0 %1320
    %v1322 = vsel %vm151, %v1318, -inf
    %1323 = vmax.xlane.f32.xlu0 %v1322
    %v1324 = vpop.xlane.xlu0 %1323
    %v1325 = vsub.f32 %v1317, %v1321
    %v1326 = vsub.f32 %v1318, %v1324
    %v1327 = vmul.f32 %v1325, 1.442695
    %v1328 = vpow.pop %v1327
    %v1329 = vmul.f32 %v1326, 1.442695
    %v1330 = vpow.pop %v1329
    %v1331 = vsel %vm151, %v1328, 0.0
    %1332 = vadd.xlane.f32.xlu0 %v1331
    %v1333 = vpop.xlane.xlu0 %1332
    %v1334 = vsel %vm151, %v1330, 0.0
    %1335 = vadd.xlane.f32.xlu0 %v1334
    %v1336 = vpop.xlane.xlu0 %1335
    %v1337 = vrcp.pop %v1333
    %v1338 = vrcp.pop %v1336
    %v1339 = vmul.f32 %v1333, %v1337
    %v1340 = vmul.f32 %v1336, %v1338
    %v1341 = vsub.f32 2.0, %v1339
    %v1342 = vsub.f32 2.0, %v1340
    %v1343 = vmul.f32 %v1337, %v1341
    %v1344 = vmul.f32 %v1338, %v1342
    %v1345 = vmul.f32 %v1328, %v1343
    %v1346 = vmul.f32 %v1330, %v1344
    %1347 = vrot.lane.b32.xlu0 %v136, 40
    %v1348 = vpop.permute.xlu0 %1347
    %v1351 = vsel %vm151, %v1345, 0
    %1353 = vmatprep.subr.mxu0 0.0
    %1354 = vmatpush1.msra.mxu0 %v1348
    %1355 = vmatprep.subr.mxu0 0.0
    %1356 = vmatpush1.msra.mxu0 0.0
    %1357 = vmatprep.subr.mxu0 0.0
    %1358 = vmatpush1.msra.mxu0 0.0
    %1359 = vmatprep.subr.mxu0 0.0
    %1360 = vmatpush1.msra.mxu0 0.0
    %1361 = vmatprep.subr.mxu0 0.0
    %1362 = vmatpush1.msra.mxu0 0.0
    %1363 = vmatprep.subr.mxu0 0.0
    %1364 = vmatpush1.msra.mxu0 0.0
    %1365 = vmatprep.subr.mxu0 0.0
    %1366 = vmatpush1.msra.mxu0 0.0
    %1367 = vmatprep.subr.mxu0 0.0
    %1368 = vmatpush1.msra.mxu0 0.0
    %1369 = vmatprep.subr.mxu0 0.0
    %1370 = vmatpush1.msra.mxu0 0.0
    %1371 = vmatprep.subr.mxu0 0.0
    %1372 = vmatpush1.msra.mxu0 0.0
    %1373 = vmatprep.subr.mxu0 0.0
    %1374 = vmatpush1.msra.mxu0 0.0
    %1375 = vmatprep.subr.mxu0 0.0
    %1376 = vmatpush1.msra.mxu0 0.0
    %1377 = vmatprep.subr.mxu0 0.0
    %1378 = vmatpush1.msra.mxu0 0.0
    %1379 = vmatprep.subr.mxu0 0.0
    %1380 = vmatpush1.msra.mxu0 0.0
    %1381 = vmatprep.subr.mxu0 0.0
    %1382 = vmatpush1.msra.mxu0 0.0
    %1383 = vmatprep.subr.mxu0 0.0
    %1384 = vmatpush1.msra.mxu0 0.0
    %1385 = vmatprep.subr.mxu0 0.0
    %1386 = vmatpush1.msra.mxu0 0.0
    %1387 = vmatprep.subr.mxu0 0.0
    %1388 = vmatpush1.msra.mxu0 0.0
    %1389 = vmatprep.subr.mxu0 0.0
    %1390 = vmatpush1.msra.mxu0 0.0
    %1391 = vmatprep.subr.mxu0 0.0
    %1392 = vmatpush1.msra.mxu0 0.0
    %1393 = vmatprep.subr.mxu0 0.0
    %1394 = vmatpush1.msra.mxu0 0.0
    %1395 = vmatprep.subr.mxu0 0.0
    %1396 = vmatpush1.msra.mxu0 0.0
    %1397 = vmatprep.subr.mxu0 0.0
    %1398 = vmatpush1.msra.mxu0 0.0
    %1399 = vmatprep.subr.mxu0 0.0
    %1400 = vmatpush1.msra.mxu0 0.0
    %1401 = vmatprep.subr.mxu0 0.0
    %1402 = vmatpush1.msra.mxu0 0.0
    %1403 = vmatprep.subr.mxu0 0.0
    %1404 = vmatpush1.msra.mxu0 0.0
    %1405 = vmatprep.subr.mxu0 0.0
    %1406 = vmatpush1.msra.mxu0 0.0
    %1407 = vmatprep.subr.mxu0 0.0
    %1408 = vmatpush1.msra.mxu0 0.0
    %1409 = vmatprep.subr.mxu0 0.0
    %1410 = vmatpush1.msra.mxu0 0.0
    %1411 = vmatprep.subr.mxu0 0.0
    %1412 = vmatpush1.msra.mxu0 0.0
    %1413 = vmatprep.subr.mxu0 0.0
    %1414 = vmatpush1.msra.mxu0 0.0
    %1415 = vmatprep.subr.mxu0 0.0
    %1416 = vmatpush1.msra.mxu0 0.0
    %1417 = vmatprep.mubr.f32.mxu0 0.0
    %1418 = vmatmul.mubr.f32.gmra.mrb[0].mxu0 %v1351
    %v1419 = vpop.f32.mrb[0].mxu0
    %v1420 = vadd.f32 0.0, %v1419
    %v1421 = vpop.f32.mrb[0].mxu0
    %1422 = vdwg.mxu0
    %1423 = vrot.lane.b32.xlu0 %v141, 40
    %v1424 = vpop.permute.xlu0 %1423
    %v1427 = vsel %vm151, %v1346, 0
    %1429 = vmatprep.subr.mxu0 0.0
    %1430 = vmatpush1.msra.mxu0 %v1424
    %1431 = vmatprep.subr.mxu0 0.0
    %1432 = vmatpush1.msra.mxu0 0.0
    %1433 = vmatprep.subr.mxu0 0.0
    %1434 = vmatpush1.msra.mxu0 0.0
    %1435 = vmatprep.subr.mxu0 0.0
    %1436 = vmatpush1.msra.mxu0 0.0
    %1437 = vmatprep.subr.mxu0 0.0
    %1438 = vmatpush1.msra.mxu0 0.0
    %1439 = vmatprep.subr.mxu0 0.0
    %1440 = vmatpush1.msra.mxu0 0.0
    %1441 = vmatprep.subr.mxu0 0.0
    %1442 = vmatpush1.msra.mxu0 0.0
    %1443 = vmatprep.subr.mxu0 0.0
    %1444 = vmatpush1.msra.mxu0 0.0
    %1445 = vmatprep.subr.mxu0 0.0
    %1446 = vmatpush1.msra.mxu0 0.0
    %1447 = vmatprep.subr.mxu0 0.0
    %1448 = vmatpush1.msra.mxu0 0.0
    %1449 = vmatprep.subr.mxu0 0.0
    %1450 = vmatpush1.msra.mxu0 0.0
    %1451 = vmatprep.subr.mxu0 0.0
    %1452 = vmatpush1.msra.mxu0 0.0
    %1453 = vmatprep.subr.mxu0 0.0
    %1454 = vmatpush1.msra.mxu0 0.0
    %1455 = vmatprep.subr.mxu0 0.0
    %1456 = vmatpush1.msra.mxu0 0.0
    %1457 = vmatprep.subr.mxu0 0.0
    %1458 = vmatpush1.msra.mxu0 0.0
    %1459 = vmatprep.subr.mxu0 0.0
    %1460 = vmatpush1.msra.mxu0 0.0
    %1461 = vmatprep.subr.mxu0 0.0
    %1462 = vmatpush1.msra.mxu0 0.0
    %1463 = vmatprep.subr.mxu0 0.0
    %1464 = vmatpush1.msra.mxu0 0.0
    %1465 = vmatprep.subr.mxu0 0.0
    %1466 = vmatpush1.msra.mxu0 0.0
    %1467 = vmatprep.subr.mxu0 0.0
    %1468 = vmatpush1.msra.mxu0 0.0
    %1469 = vmatprep.subr.mxu0 0.0
    %1470 = vmatpush1.msra.mxu0 0.0
    %1471 = vmatprep.subr.mxu0 0.0
    %1472 = vmatpush1.msra.mxu0 0.0
    %1473 = vmatprep.subr.mxu0 0.0
    %1474 = vmatpush1.msra.mxu0 0.0
    %1475 = vmatprep.subr.mxu0 0.0
    %1476 = vmatpush1.msra.mxu0 0.0
    %1477 = vmatprep.subr.mxu0 0.0
    %1478 = vmatpush1.msra.mxu0 0.0
    %1479 = vmatprep.subr.mxu0 0.0
    %1480 = vmatpush1.msra.mxu0 0.0
    %1481 = vmatprep.subr.mxu0 0.0
    %1482 = vmatpush1.msra.mxu0 0.0
    %1483 = vmatprep.subr.mxu0 0.0
    %1484 = vmatpush1.msra.mxu0 0.0
    %1485 = vmatprep.subr.mxu0 0.0
    %1486 = vmatpush1.msra.mxu0 0.0
    %1487 = vmatprep.subr.mxu0 0.0
    %1488 = vmatpush1.msra.mxu0 0.0
    %1489 = vmatprep.subr.mxu0 0.0
    %1490 = vmatpush1.msra.mxu0 0.0
    %1491 = vmatprep.subr.mxu0 0.0
    %1492 = vmatpush1.msra.mxu0 0.0
    %1493 = vmatprep.mubr.f32.mxu0 0.0
    %1494 = vmatmul.mubr.f32.gmra.mrb[0].mxu0 %v1427
    %v1495 = vpop.f32.mrb[0].mxu0
    %v1496 = vadd.f32 0.0, %v1495
    %v1497 = vpop.f32.mrb[0].mxu0
    %1498 = vdwg.mxu0
    %1501 = vrot.lane.b32.xlu0 %v744, 8
    %v1502 = vpop.permute.xlu0 %1501
    %1503 = vrot.lane.b32.xlu0 %v820, 8
    %v1504 = vpop.permute.xlu0 %1503
    %1509 = vrot.lane.b32.xlu0 %v1082, 16
    %v1510 = vpop.permute.xlu0 %1509
    %1511 = vrot.lane.b32.xlu0 %v1158, 16
    %v1512 = vpop.permute.xlu0 %1511
    %1517 = vrot.lane.b32.xlu0 %v1420, 24
    %v1518 = vpop.permute.xlu0 %1517
    %1519 = vrot.lane.b32.xlu0 %v1496, 24
    %v1520 = vpop.permute.xlu0 %1519
    %v1523 = vsel %vm151, %v406, %v1502
    %v1524 = vsel %vm151, %v482, %v1504
    %vm1525 = vcmask 130048
    %v1526 = vsel %vm1525, %v1523, %v1510
    %v1527 = vsel %vm1525, %v1524, %v1512
    %vm1528 = vcmask 195584
    %v1529 = vsel %vm1528, %v1526, %v1518
    %v1530 = vsel %vm1528, %v1527, %v1520
    %v1532 = vsel %vm62, %v1529, 0
    %v1535 = vsel %vm62, %v1530, 0
    %1537 = vmatprep.subr.mxu0 0.0
    %1538 = vmatpush1.msra.mxu0 %v144
    %1539 = vmatprep.subr.mxu0 0.0
    %1540 = vmatpush1.msra.mxu0 %v145
    %1541 = vmatprep.subr.mxu0 0.0
    %1542 = vmatpush1.msra.mxu0 %v146
    %1543 = vmatprep.subr.mxu0 0.0
    %1544 = vmatpush1.msra.mxu0 %v147
    %1545 = vmatprep.subr.mxu0 0.0
    %1546 = vmatpush1.msra.mxu0 0.0
    %1547 = vmatprep.subr.mxu0 0.0
    %1548 = vmatpush1.msra.mxu0 0.0
    %1549 = vmatprep.subr.mxu0 0.0
    %1550 = vmatpush1.msra.mxu0 0.0
    %1551 = vmatprep.subr.mxu0 0.0
    %1552 = vmatpush1.msra.mxu0 0.0
    %1553 = vmatprep.subr.mxu0 0.0
    %1554 = vmatpush1.msra.mxu0 0.0
    %1555 = vmatprep.subr.mxu0 0.0
    %1556 = vmatpush1.msra.mxu0 0.0
    %1557 = vmatprep.subr.mxu0 0.0
    %1558 = vmatpush1.msra.mxu0 0.0
    %1559 = vmatprep.subr.mxu0 0.0
    %1560 = vmatpush1.msra.mxu0 0.0
    %1561 = vmatprep.subr.mxu0 0.0
    %1562 = vmatpush1.msra.mxu0 0.0
    %1563 = vmatprep.subr.mxu0 0.0
    %1564 = vmatpush1.msra.mxu0 0.0
    %1565 = vmatprep.subr.mxu0 0.0
    %1566 = vmatpush1.msra.mxu0 0.0
    %1567 = vmatprep.subr.mxu0 0.0
    %1568 = vmatpush1.msra.mxu0 0.0
    %1569 = vmatprep.subr.mxu0 0.0
    %1570 = vmatpush1.msra.mxu0 0.0
    %1571 = vmatprep.subr.mxu0 0.0
    %1572 = vmatpush1.msra.mxu0 0.0
    %1573 = vmatprep.subr.mxu0 0.0
    %1574 = vmatpush1.msra.mxu0 0.0
    %1575 = vmatprep.subr.mxu0 0.0
    %1576 = vmatpush1.msra.mxu0 0.0
    %1577 = vmatprep.subr.mxu0 0.0
    %1578 = vmatpush1.msra.mxu0 0.0
    %1579 = vmatprep.subr.mxu0 0.0
    %1580 = vmatpush1.msra.mxu0 0.0
    %1581 = vmatprep.subr.mxu0 0.0
    %1582 = vmatpush1.msra.mxu0 0.0
    %1583 = vmatprep.subr.mxu0 0.0
    %1584 = vmatpush1.msra.mxu0 0.0
    %1585 = vmatprep.subr.mxu0 0.0
    %1586 = vmatpush1.msra.mxu0 0.0
    %1587 = vmatprep.subr.mxu0 0.0
    %1588 = vmatpush1.msra.mxu0 0.0
    %1589 = vmatprep.subr.mxu0 0.0
    %1590 = vmatpush1.msra.mxu0 0.0
    %1591 = vmatprep.subr.mxu0 0.0
    %1592 = vmatpush1.msra.mxu0 0.0
    %1593 = vmatprep.subr.mxu0 0.0
    %1594 = vmatpush1.msra.mxu0 0.0
    %1595 = vmatprep.subr.mxu0 0.0
    %1596 = vmatpush1.msra.mxu0 0.0
    %1597 = vmatprep.subr.mxu0 0.0
    %1598 = vmatpush1.msra.mxu0 0.0
    %1599 = vmatprep.subr.mxu0 0.0
    %1600 = vmatpush1.msra.mxu0 0.0
    %1601 = vmatprep.mubr.f32.mxu0 0.0
    %1602 = vmatmul.mubr.f32.gmra.mrb[0].mxu0 %v1532
    %v1603 = vpop.f32.mrb[0].mxu0
    %v1604 = vadd.f32 0.0, %v1603
    %v1605 = vpop.f32.mrb[0].mxu0
    %1606 = vmatprep.mubr.f32.mxu0 0.0
    %1607 = vmatmul.mubr.f32.gmra.mrb[0].mxu0 %v1535
    %v1608 = vpop.f32.mrb[0].mxu0
    %v1609 = vadd.f32 0.0, %v1608
    %v1610 = vpop.f32.mrb[0].mxu0
    %1611 = vdwg.mxu0
    %1612 = vst.msk [vmem:[#allocation8] sm:$0xff] %vm62, %v1604
    %1613 = vst.msk [vmem:[#allocation8 + $0x8] sm:$0xff] %vm62, %v1609
    // Predicated region
    $region26: #{tpu_custom_call.1} parent=1 // pred_check
      _
    $region27: #{tpu_custom_call.1} parent=1 // pred_check_branch
      %1615 = sbr.rel (0) target = $region29
    $region28: #{tpu_custom_call.1} parent=1 // pred_region
      %s1617 = ssub.s32 256, 256
      %1618 = vsyncadd [#allocation4], %s1617
      %s1619 = sshll.u32 [#allocation8], 4
      %s1620 = int_to_ptr.vmem [resolvable:$true] %s1619
      %1625 = dma.vmem_to_hbm [thread:$0]  %s1620, 256, %s3, [#allocation4], 128, 128, 8
    $region29: #{tpu_custom_call.1} parent=1 // pred_fallthru
      _
    // Predicated region
    $region30: #{tpu_custom_call.1} parent=1 // pred_check
      _
    $region31: #{tpu_custom_call.1} parent=1 // pred_check_branch
      %1627 = sbr.rel (0) target = $region33
    $region32: #{tpu_custom_call.1} parent=1 // pred_region
      %1628 = dma.done [#allocation4], 256
    $region33: #{tpu_custom_call.1} parent=1 // pred_fallthru
      _
    %1629 = vsyncpa [#allocation3], 1
    %1630 = vsyncpa [#allocation6], 1
    %1631 = vsyncpa [#allocation4], 1

</llo_original>
